<compile_context>
chip_gen: v5e
topology: v5e:2x2
jax: 0.10.0
libtpu: 0.0.40
codegen_flags: <defaults>
</compile_context>

<pallas_src>
import functools

import jax
import jax.numpy as jnp
from jax.experimental import pallas as pl
from jax.experimental.pallas import tpu as pltpu

_ACT_DTYPE = jnp.bfloat16  # inter-layer activation / matmul-input dtype (f32 accumulate)


def _compiler_params(n_grid_axes, block_bytes):
    # Blocks are small; allow double-buffering headroom and clamp to a limit that is
    # portable across v5e/v6e (128 MiB VMEM) and v7x (64 MiB VMEM).
    vmem = int(min(max(4 * block_bytes + (2 << 20), 4 << 20), 32 << 20))
    return pltpu.CompilerParams(
        dimension_semantics=("parallel",) * n_grid_axes,
        vmem_limit_bytes=vmem,
    )


def _row_tile(rows, max_tile=1024):
    """Largest legal row tile: full extent if small, else a multiple-of-8 divisor."""
    if rows <= max_tile:
        return rows
    for cand in (1024, 768, 512, 384, 256, 128, 64, 32, 16, 8):
        if rows % cand == 0:
            return cand
    # TODO(synk): pad odd batch*height products instead of falling back to one block.
    return rows


# ----------------------------------------------------------------------------
# Kernel A: fused Conv3x3(pad=1) + bias + ReLU + MaxPool2x2 (one image per step)
# ----------------------------------------------------------------------------
def _conv_relu_pool_kernel(x_ref, w_ref, b_ref, o_ref, *, ho, wp_cin, wo_c):
    """x_ref : (1, Hp//2, 2*Wp*Cin)   zero-padded image, row pairs packed on lanes (bf16)
       w_ref : (3, Wp*Cin, 2*Wo*Cout) banded conv weights, one slab per kernel row (bf16)
       b_ref : (1, Wo*Cout)           bias tiled over pooled output columns (f32)
       o_ref : (1, Ho, Wo*Cout)       pooled output, columns = jo*Cout + co
    """

    def row_slab(s):
        # Padded-image rows s, s+2, ..., s+2*(Ho-1), shape (Ho, Wp*Cin); the row-pair
        # lane packing turns the stride-2 row selection into a contiguous static slice.
        q0 = s // 2
        off = (s % 2) * wp_cin
        return x_ref[0, q0:q0 + ho, off:off + wp_cin]

    pooled = None
    for p_i in range(2):          # conv-output row parity (vertical pool partner)
        acc = None
        for di in range(3):       # conv kernel row
            part = jnp.dot(row_slab(p_i + di), w_ref[di],
                           preferred_element_type=jnp.float32)
            acc = part if acc is None else acc + part
        # Columns are [even output cols | odd output cols]: the horizontal 2x2 pool is
        # an elementwise max of the two halves.
        h = jnp.maximum(acc[:, :wo_c], acc[:, wo_c:])
        pooled = h if pooled is None else jnp.maximum(pooled, h)   # vertical pool
    y = jnp.maximum(pooled + b_ref[...], 0.0)                      # bias + ReLU in f32
    o_ref[0] = y.astype(o_ref.dtype)


def conv3x3_relu_pool(x_nhwc, w_torch, b):
    """x_nhwc: (N, H, W, Cin) bf16; w_torch: (Cout, Cin, 3, 3); b: (Cout,).
    Returns the pooled activation packed lane-dense as (N, H//2, (W//2)*Cout) bf16."""
    N, H, W, Cin = x_nhwc.shape
    Cout = int(w_torch.shape[0])
    assert H % 2 == 0 and W % 2 == 0, (H, W)
    Ho, Wo = H // 2, W // 2
    Hp, Wp = H + 2, W + 2
    wp_cin = Wp * Cin
    wo_c = Wo * Cout

    # ---- glue (cheap XLA ops outside the kernel) ---------------------------------
    xpad = jnp.pad(x_nhwc, ((0, 0), (1, 1), (1, 1), (0, 0)))
    x_pk = xpad.reshape(N, Hp // 2, 2 * wp_cin)        # pack row pairs along lanes

    # Banded weights:
    #   w_cat[di, p*Cin+ci, pj*Wo*Cout + jo*Cout + co] = w[di, dj, ci, co]
    #   with dj = p - (2*jo + pj) when 0 <= dj <= 2, else 0.
    w = jnp.transpose(w_torch, (2, 3, 1, 0)).astype(jnp.float32)   # (kh, kw, Cin, Cout)
    jo = jnp.arange(Wo)[:, None, None, None]
    pj = jnp.arange(2)[None, :, None, None]
    dj = jnp.arange(3)[None, None, :, None]
    pp = jnp.arange(Wp)[None, None, None, :]
    sel = (pp == 2 * jo + pj + dj).astype(jnp.float32)             # (Wo, 2, 3, Wp)
    w_cat = jnp.einsum("jqdp,edic->epiqjc", sel, w)                # (3, Wp, Cin, 2, Wo, Cout)
    w_cat = w_cat.reshape(3, wp_cin, 2 * wo_c).astype(_ACT_DTYPE)
    b_row = jnp.tile(b.astype(jnp.float32), Wo).reshape(1, wo_c)

    kernel = functools.partial(_conv_relu_pool_kernel, ho=Ho, wp_cin=wp_cin, wo_c=wo_c)
    block_bytes = ((Hp // 2) * 2 * wp_cin * 2 + 3 * wp_cin * 2 * wo_c * 2
                   + wo_c * 4 + Ho * wo_c * 2)

    # TODO(synk): for large spatial resolutions, additionally tile Ho with a one-row
    # halo on the packed input instead of keeping a whole image resident per grid step.
    return pl.pallas_call(
        kernel,
        out_shape=jax.ShapeDtypeStruct((N, Ho, wo_c), _ACT_DTYPE),
        grid=(N,),
        in_specs=[
            pl.BlockSpec((1, Hp // 2, 2 * wp_cin), lambda n: (n, 0, 0)),
            pl.BlockSpec((3, wp_cin, 2 * wo_c), lambda n: (0, 0, 0)),
            pl.BlockSpec((1, wo_c), lambda n: (0, 0)),
        ],
        out_specs=pl.BlockSpec((1, Ho, wo_c), lambda n: (n, 0, 0)),
        compiler_params=_compiler_params(1, block_bytes),
        cost_estimate=pl.CostEstimate(
            flops=int(N * 6 * 2 * Ho * wp_cin * 2 * wo_c),
            transcendentals=0,
            bytes_accessed=int(N * (Hp // 2) * 2 * wp_cin * 2
                               + 3 * wp_cin * 2 * wo_c * 2 + wo_c * 4
                               + N * Ho * wo_c * 2),
        ),
    )(x_pk, w_cat, b_row)


# ----------------------------------------------------------------------------
# Kernel B: fused ConvTranspose2x2(stride 2) + bias + activation (pixel shuffle
# folded into the weight column order -> lane-dense stores, no XLA transpose).
# Batch and rows are flattened into one 2D matmul tiled only over rows.
# ----------------------------------------------------------------------------
def _matmul_bias_act_kernel(x_ref, w_ref, b_ref, o_ref, *, act):
    y = jnp.dot(x_ref[...], w_ref[...], preferred_element_type=jnp.float32)
    y = y + b_ref[...]
    if act == "relu":
        y = jnp.maximum(y, 0.0)
    elif act == "sigmoid":
        # Numerically stable sigmoid; exp runs on the otherwise-idle EUP slot.
        e = jnp.exp(-jnp.abs(y))
        r = 1.0 / (1.0 + e)
        y = jnp.where(y >= 0.0, r, 1.0 - r)
    o_ref[...] = y.astype(o_ref.dtype)


def convtranspose2x2_s2(x_pack, w_torch, b, act, out_dtype):
    """x_pack: (N, H, W*Cin) bf16 with columns = j*Cin + ci.
    w_torch: (Cin, Cout, 2, 2); b: (Cout,).
    Returns (N, H, 4*W*Cout) with columns ordered (di, j, dj, co); a plain row-major
    reshape to (N, 2H, 2W, Cout) outside the kernel is free (pixel shuffle in-weights)."""
    N, H, w_cin = x_pack.shape
    Cin, Cout = int(w_torch.shape[0]), int(w_torch.shape[1])
    W = w_cin // Cin
    ncols = 4 * W * Cout
    rows = N * H
    x2d = x_pack.reshape(rows, w_cin)                              # free reshape

    # Block-diagonal weights with the pixel-shuffle column order (di, j, dj, co).
    # TODO(synk): for very large W, tile the weight columns instead of keeping the
    # full block-diagonal matrix resident in VMEM.
    eye = jnp.eye(W, dtype=jnp.float32)
    w_d = jnp.einsum("jk,acde->jadkec", eye, w_torch.astype(jnp.float32))
    w_d = w_d.reshape(w_cin, ncols).astype(_ACT_DTYPE)
    b_row = jnp.tile(b.astype(jnp.float32), 4 * W).reshape(1, ncols)

    tm = _row_tile(rows)
    grid = (rows // tm,)

    kernel = functools.partial(_matmul_bias_act_kernel, act=act)
    out_bytes = jnp.dtype(out_dtype).itemsize
    block_bytes = tm * w_cin * 2 + w_cin * ncols * 2 + ncols * 4 + tm * ncols * out_bytes
    out = pl.pallas_call(
        kernel,
        out_shape=jax.ShapeDtypeStruct((rows, ncols), out_dtype),
        grid=grid,
        in_specs=[
            pl.BlockSpec((tm, w_cin), lambda r: (r, 0)),
            pl.BlockSpec((w_cin, ncols), lambda r: (0, 0)),
            pl.BlockSpec((1, ncols), lambda r: (0, 0)),
        ],
        out_specs=pl.BlockSpec((tm, ncols), lambda r: (r, 0)),
        compiler_params=_compiler_params(1, block_bytes),
        cost_estimate=pl.CostEstimate(
            flops=int(2 * rows * w_cin * ncols),
            transcendentals=int(rows * ncols) if act == "sigmoid" else 0,
            bytes_accessed=int(rows * w_cin * 2 + w_cin * ncols * 2 + ncols * 4
                               + rows * ncols * out_bytes),
        ),
    )(x2d, w_d, b_row)
    return out.reshape(N, H, ncols)                                # free reshape


# ----------------------------------------------------------------------------
# Autoencoder forward
# ----------------------------------------------------------------------------
def init_params(key):
    """Deterministic synthetic parameter init (PyTorch weight layouts)."""
    ks = jax.random.split(key, 8)

    def u(k, shape, fan_in):
        bound = 1.0 / jnp.sqrt(fan_in)
        return jax.random.uniform(k, shape, jnp.float32, -bound, bound)

    return {
        # enc: Conv2d(3, 16, 3, padding=1)
        "enc1_w": u(ks[0], (16, 3, 3, 3), 3 * 9),
        "enc1_b": u(ks[1], (16,), 3 * 9),
        # enc: Conv2d(16, 4, 3, padding=1)
        "enc2_w": u(ks[2], (4, 16, 3, 3), 16 * 9),
        "enc2_b": u(ks[3], (4,), 16 * 9),
        # dec: ConvTranspose2d(4, 16, 2, stride=2) -> weight (Cin, Cout, 2, 2)
        "dec1_w": u(ks[4], (4, 16, 2, 2), 4 * 4),
        "dec1_b": u(ks[5], (16,), 4 * 4),
        # dec: ConvTranspose2d(16, 3, 2, stride=2)
        "dec2_w": u(ks[6], (16, 3, 2, 2), 16 * 4),
        "dec2_b": u(ks[7], (3,), 16 * 4),
    }


@jax.jit
def autoencoder_forward(x_nchw, params):
    N, _, H, W = x_nchw.shape
    # NCHW -> NHWC, cast matmul inputs to bf16 (accumulation stays f32 in-kernel).
    x = jnp.transpose(x_nchw, (0, 2, 3, 1)).astype(_ACT_DTYPE)

    # Encoder: two fused conv3x3 + ReLU + maxpool2x2 kernels.
    h = conv3x3_relu_pool(x, params["enc1_w"], params["enc1_b"])        # (N, H/2, (W/2)*16)
    c1 = int(params["enc1_w"].shape[0])
    h = h.reshape(N, H // 2, W // 2, c1)                                 # free reshape
    h = conv3x3_relu_pool(h, params["enc2_w"], params["enc2_b"])         # (N, H/4, (W/4)*4)

    # Decoder: two fused convtranspose kernels (pixel shuffle folded into weights).
    h = convtranspose2x2_s2(h, params["dec1_w"], params["dec1_b"],
                            act="relu", out_dtype=_ACT_DTYPE)            # (N, H/4, W*16)
    c3 = int(params["dec1_w"].shape[1])
    h = h.reshape(N, H // 2, (W // 2) * c3)                              # free reshape
    h = convtranspose2x2_s2(h, params["dec2_w"], params["dec2_b"],
                            act="sigmoid", out_dtype=jnp.float32)        # (N, H/2, 2*W*3)
    c4 = int(params["dec2_w"].shape[1])
    out = h.reshape(N, H, W, c4)                                         # free reshape (NHWC)
    return jnp.transpose(out, (0, 3, 1, 2))                              # NHWC -> NCHW


if __name__ == "__main__":
    key = jax.random.PRNGKey(0)
    k_x, k_p = jax.random.split(key)

    # PyTorch-convention NCHW input: batch=2, channels=3, 16x16 spatial.
    x = jax.random.normal(k_x, (2, 3, 16, 16), dtype=jnp.float32)
    params = init_params(k_p)

    out = autoencoder_forward(x, params)
    out = jax.block_until_ready(out)

    assert out.shape == (2, 3, 16, 16), out.shape
    assert out.dtype == jnp.float32
    assert bool(jnp.all(jnp.isfinite(out)))
    assert bool(jnp.all(out >= 0.0)) and bool(jnp.all(out <= 1.0))  # sigmoid range
    print("KERNEL_OK")
</pallas_src>

<mosaic_0001>
module attributes {stable_mosaic.version = 11 : i64} {
  func.func @_conv_relu_pool_kernel(%arg0: i32, %arg1: memref<1x9x108xbf16, #tpu.memory_space<vmem>>, %arg2: memref<3x54x256xbf16, #tpu.memory_space<vmem>>, %arg3: memref<1x128xf32, #tpu.memory_space<vmem>>, %arg4: memref<1x8x128xbf16, #tpu.memory_space<vmem>>) attributes {dimension_semantics = [#tpu.dimension_semantics<parallel>], iteration_bounds = array<i64: 2>, scalar_prefetch = 0 : i64, scratch_operands = 0 : i64, tpu.core_type = #tpu.core_type<tc>, window_params = [{transform_indices = @transform_0, window_bounds = array<i64: 1, 9, 108>}, {pipeline_mode = #tpu.pipeline_mode<synchronous>, transform_indices = @transform_1, window_bounds = array<i64: 3, 54, 256>}, {pipeline_mode = #tpu.pipeline_mode<synchronous>, transform_indices = @transform_2, window_bounds = array<i64: 1, 128>}, {transform_indices = @transform_3, window_bounds = array<i64: 1, 8, 128>}]} {
    %c0 = arith.constant 0 : index
    %c0_0 = arith.constant 0 : index
    %c0_1 = arith.constant 0 : index
    %0 = vector.load %arg1[%c0, %c0_0, %c0_1] : memref<1x9x108xbf16, #tpu.memory_space<vmem>>, vector<1x8x54xbf16>
    %1 = vector.shape_cast %0 : vector<1x8x54xbf16> to vector<8x54xbf16>
    %c0_2 = arith.constant 0 : index
    %c0_3 = arith.constant 0 : index
    %c0_4 = arith.constant 0 : index
    %2 = vector.load %arg2[%c0_2, %c0_3, %c0_4] : memref<3x54x256xbf16, #tpu.memory_space<vmem>>, vector<1x54x256xbf16>
    %3 = vector.shape_cast %2 : vector<1x54x256xbf16> to vector<54x256xbf16>
    %cst = arith.constant dense<0.000000e+00> : vector<8x256xf32>
    %4 = tpu.matmul %1, %3, %cst {dimension_numbers = #tpu.dot_dimension_numbers<[1], [0], [0], [1], [0, 0, 1, 1], [], []>} : vector<8x54xbf16>, vector<54x256xbf16>, vector<8x256xf32> -> vector<8x256xf32>
    %c0_5 = arith.constant 0 : index
    %c0_6 = arith.constant 0 : index
    %c54 = arith.constant 54 : index
    %5 = vector.load %arg1[%c0_5, %c0_6, %c54] : memref<1x9x108xbf16, #tpu.memory_space<vmem>>, vector<1x8x54xbf16>
    %6 = vector.shape_cast %5 : vector<1x8x54xbf16> to vector<8x54xbf16>
    %c1 = arith.constant 1 : index
    %c0_7 = arith.constant 0 : index
    %c0_8 = arith.constant 0 : index
    %7 = vector.load %arg2[%c1, %c0_7, %c0_8] : memref<3x54x256xbf16, #tpu.memory_space<vmem>>, vector<1x54x256xbf16>
    %8 = vector.shape_cast %7 : vector<1x54x256xbf16> to vector<54x256xbf16>
    %cst_9 = arith.constant dense<0.000000e+00> : vector<8x256xf32>
    %9 = tpu.matmul %6, %8, %cst_9 {dimension_numbers = #tpu.dot_dimension_numbers<[1], [0], [0], [1], [0, 0, 1, 1], [], []>} : vector<8x54xbf16>, vector<54x256xbf16>, vector<8x256xf32> -> vector<8x256xf32>
    %10 = arith.addf %4, %9 : vector<8x256xf32>
    %c0_10 = arith.constant 0 : index
    %c1_11 = arith.constant 1 : index
    %c0_12 = arith.constant 0 : index
    %11 = vector.load %arg1[%c0_10, %c1_11, %c0_12] : memref<1x9x108xbf16, #tpu.memory_space<vmem>>, vector<1x8x54xbf16>
    %12 = vector.shape_cast %11 : vector<1x8x54xbf16> to vector<8x54xbf16>
    %c2 = arith.constant 2 : index
    %c0_13 = arith.constant 0 : index
    %c0_14 = arith.constant 0 : index
    %13 = vector.load %arg2[%c2, %c0_13, %c0_14] : memref<3x54x256xbf16, #tpu.memory_space<vmem>>, vector<1x54x256xbf16>
    %14 = vector.shape_cast %13 : vector<1x54x256xbf16> to vector<54x256xbf16>
    %cst_15 = arith.constant dense<0.000000e+00> : vector<8x256xf32>
    %15 = tpu.matmul %12, %14, %cst_15 {dimension_numbers = #tpu.dot_dimension_numbers<[1], [0], [0], [1], [0, 0, 1, 1], [], []>} : vector<8x54xbf16>, vector<54x256xbf16>, vector<8x256xf32> -> vector<8x256xf32>
    %16 = arith.addf %10, %15 : vector<8x256xf32>
    %17 = vector.extract_strided_slice %16 {offsets = [0, 0], sizes = [8, 128], strides = [1, 1]} : vector<8x256xf32> to vector<8x128xf32>
    %18 = vector.extract_strided_slice %16 {offsets = [0, 128], sizes = [8, 128], strides = [1, 1]} : vector<8x256xf32> to vector<8x128xf32>
    %19 = arith.maximumf %17, %18 : vector<8x128xf32>
    %c0_16 = arith.constant 0 : index
    %c0_17 = arith.constant 0 : index
    %c54_18 = arith.constant 54 : index
    %20 = vector.load %arg1[%c0_16, %c0_17, %c54_18] : memref<1x9x108xbf16, #tpu.memory_space<vmem>>, vector<1x8x54xbf16>
    %21 = vector.shape_cast %20 : vector<1x8x54xbf16> to vector<8x54xbf16>
    %c0_19 = arith.constant 0 : index
    %c0_20 = arith.constant 0 : index
    %c0_21 = arith.constant 0 : index
    %22 = vector.load %arg2[%c0_19, %c0_20, %c0_21] : memref<3x54x256xbf16, #tpu.memory_space<vmem>>, vector<1x54x256xbf16>
    %23 = vector.shape_cast %22 : vector<1x54x256xbf16> to vector<54x256xbf16>
    %cst_22 = arith.constant dense<0.000000e+00> : vector<8x256xf32>
    %24 = tpu.matmul %21, %23, %cst_22 {dimension_numbers = #tpu.dot_dimension_numbers<[1], [0], [0], [1], [0, 0, 1, 1], [], []>} : vector<8x54xbf16>, vector<54x256xbf16>, vector<8x256xf32> -> vector<8x256xf32>
    %c0_23 = arith.constant 0 : index
    %c1_24 = arith.constant 1 : index
    %c0_25 = arith.constant 0 : index
    %25 = vector.load %arg1[%c0_23, %c1_24, %c0_25] : memref<1x9x108xbf16, #tpu.memory_space<vmem>>, vector<1x8x54xbf16>
    %26 = vector.shape_cast %25 : vector<1x8x54xbf16> to vector<8x54xbf16>
    %c1_26 = arith.constant 1 : index
    %c0_27 = arith.constant 0 : index
    %c0_28 = arith.constant 0 : index
    %27 = vector.load %arg2[%c1_26, %c0_27, %c0_28] : memref<3x54x256xbf16, #tpu.memory_space<vmem>>, vector<1x54x256xbf16>
    %28 = vector.shape_cast %27 : vector<1x54x256xbf16> to vector<54x256xbf16>
    %cst_29 = arith.constant dense<0.000000e+00> : vector<8x256xf32>
    %29 = tpu.matmul %26, %28, %cst_29 {dimension_numbers = #tpu.dot_dimension_numbers<[1], [0], [0], [1], [0, 0, 1, 1], [], []>} : vector<8x54xbf16>, vector<54x256xbf16>, vector<8x256xf32> -> vector<8x256xf32>
    %30 = arith.addf %24, %29 : vector<8x256xf32>
    %c0_30 = arith.constant 0 : index
    %c1_31 = arith.constant 1 : index
    %c54_32 = arith.constant 54 : index
    %31 = vector.load %arg1[%c0_30, %c1_31, %c54_32] : memref<1x9x108xbf16, #tpu.memory_space<vmem>>, vector<1x8x54xbf16>
    %32 = vector.shape_cast %31 : vector<1x8x54xbf16> to vector<8x54xbf16>
    %c2_33 = arith.constant 2 : index
    %c0_34 = arith.constant 0 : index
    %c0_35 = arith.constant 0 : index
    %33 = vector.load %arg2[%c2_33, %c0_34, %c0_35] : memref<3x54x256xbf16, #tpu.memory_space<vmem>>, vector<1x54x256xbf16>
    %34 = vector.shape_cast %33 : vector<1x54x256xbf16> to vector<54x256xbf16>
    %cst_36 = arith.constant dense<0.000000e+00> : vector<8x256xf32>
    %35 = tpu.matmul %32, %34, %cst_36 {dimension_numbers = #tpu.dot_dimension_numbers<[1], [0], [0], [1], [0, 0, 1, 1], [], []>} : vector<8x54xbf16>, vector<54x256xbf16>, vector<8x256xf32> -> vector<8x256xf32>
    %36 = arith.addf %30, %35 : vector<8x256xf32>
    %37 = vector.extract_strided_slice %36 {offsets = [0, 0], sizes = [8, 128], strides = [1, 1]} : vector<8x256xf32> to vector<8x128xf32>
    %38 = vector.extract_strided_slice %36 {offsets = [0, 128], sizes = [8, 128], strides = [1, 1]} : vector<8x256xf32> to vector<8x128xf32>
    %39 = arith.maximumf %37, %38 : vector<8x128xf32>
    %40 = arith.maximumf %19, %39 : vector<8x128xf32>
    %c0_37 = arith.constant 0 : index
    %c0_38 = arith.constant 0 : index
    %41 = vector.load %arg3[%c0_37, %c0_38] : memref<1x128xf32, #tpu.memory_space<vmem>>, vector<1x128xf32>
    %42 = vector.broadcast %41 : vector<1x128xf32> to vector<8x128xf32>
    %43 = arith.addf %40, %42 : vector<8x128xf32>
    %cst_39 = arith.constant 0.000000e+00 : f32
    %44 = vector.broadcast %cst_39 : f32 to vector<8x128xf32>
    %45 = arith.maximumf %43, %44 : vector<8x128xf32>
    %46 = arith.truncf %45 : vector<8x128xf32> to vector<8x128xbf16>
    %c0_40 = arith.constant 0 : index
    %c0_41 = arith.constant 0 : index
    %c0_42 = arith.constant 0 : index
    %47 = vector.load %arg4[%c0_40, %c0_41, %c0_42] : memref<1x8x128xbf16, #tpu.memory_space<vmem>>, vector<1x8x128xbf16>
    %48 = vector.shape_cast %47 : vector<1x8x128xbf16> to vector<8x128xbf16>
    %49 = vector.shape_cast %46 : vector<8x128xbf16> to vector<1x8x128xbf16>
    tpu.vector_store %arg4[%c0_40, %c0_41, %c0_42], %49 {strides = array<i32>} : memref<1x8x128xbf16, #tpu.memory_space<vmem>>, vector<1x8x128xbf16>,
    return
  }
  func.func @transform_0(%arg0: i32) -> (i32, i32, i32) {
    %c0_i32 = arith.constant 0 : i32
    %c0_i32_0 = arith.constant 0 : i32
    %c0_i32_1 = arith.constant 0 : i32
    return %arg0, %c0_i32, %c0_i32_0 : i32, i32, i32
  }
  func.func @transform_1(%arg0: i32) -> (i32, i32, i32) {
    %c0_i32 = arith.constant 0 : i32
    %c0_i32_0 = arith.constant 0 : i32
    %c0_i32_1 = arith.constant 0 : i32
    %c0_i32_2 = arith.constant 0 : i32
    return %c0_i32, %c0_i32_0, %c0_i32_1 : i32, i32, i32
  }
  func.func @transform_2(%arg0: i32) -> (i32, i32) {
    %c0_i32 = arith.constant 0 : i32
    %c0_i32_0 = arith.constant 0 : i32
    %c0_i32_1 = arith.constant 0 : i32
    return %c0_i32, %c0_i32_0 : i32, i32
  }
  func.func @transform_3(%arg0: i32) -> (i32, i32, i32) {
    %c0_i32 = arith.constant 0 : i32
    %c0_i32_0 = arith.constant 0 : i32
    %c0_i32_1 = arith.constant 0 : i32
    return %arg0, %c0_i32, %c0_i32_0 : i32, i32, i32
  }
}

module attributes {stable_mosaic.version = 11 : i64} {
  func.func @_conv_relu_pool_kernel(%arg0: i32, %arg1: memref<1x5x320xbf16, #tpu.memory_space<vmem>>, %arg2: memref<3x160x32xbf16, #tpu.memory_space<vmem>>, %arg3: memref<1x16xf32, #tpu.memory_space<vmem>>, %arg4: memref<1x4x16xbf16, #tpu.memory_space<vmem>>) attributes {dimension_semantics = [#tpu.dimension_semantics<parallel>], iteration_bounds = array<i64: 2>, scalar_prefetch = 0 : i64, scratch_operands = 0 : i64, tpu.core_type = #tpu.core_type<tc>, window_params = [{transform_indices = @transform_0, window_bounds = array<i64: 1, 5, 320>}, {pipeline_mode = #tpu.pipeline_mode<synchronous>, transform_indices = @transform_1, window_bounds = array<i64: 3, 160, 32>}, {pipeline_mode = #tpu.pipeline_mode<synchronous>, transform_indices = @transform_2, window_bounds = array<i64: 1, 16>}, {transform_indices = @transform_3, window_bounds = array<i64: 1, 4, 16>}]} {
    %c0 = arith.constant 0 : index
    %c0_0 = arith.constant 0 : index
    %c0_1 = arith.constant 0 : index
    %0 = vector.load %arg1[%c0, %c0_0, %c0_1] : memref<1x5x320xbf16, #tpu.memory_space<vmem>>, vector<1x4x160xbf16>
    %1 = vector.shape_cast %0 : vector<1x4x160xbf16> to vector<4x160xbf16>
    %c0_2 = arith.constant 0 : index
    %c0_3 = arith.constant 0 : index
    %c0_4 = arith.constant 0 : index
    %2 = vector.load %arg2[%c0_2, %c0_3, %c0_4] : memref<3x160x32xbf16, #tpu.memory_space<vmem>>, vector<1x160x32xbf16>
    %3 = vector.shape_cast %2 : vector<1x160x32xbf16> to vector<160x32xbf16>
    %cst = arith.constant dense<0.000000e+00> : vector<4x32xf32>
    %4 = tpu.matmul %1, %3, %cst {dimension_numbers = #tpu.dot_dimension_numbers<[1], [0], [0], [1], [0, 0, 1, 1], [], []>} : vector<4x160xbf16>, vector<160x32xbf16>, vector<4x32xf32> -> vector<4x32xf32>
    %c0_5 = arith.constant 0 : index
    %c0_6 = arith.constant 0 : index
    %c160 = arith.constant 160 : index
    %5 = vector.load %arg1[%c0_5, %c0_6, %c160] : memref<1x5x320xbf16, #tpu.memory_space<vmem>>, vector<1x4x160xbf16>
    %6 = vector.shape_cast %5 : vector<1x4x160xbf16> to vector<4x160xbf16>
    %c1 = arith.constant 1 : index
    %c0_7 = arith.constant 0 : index
    %c0_8 = arith.constant 0 : index
    %7 = vector.load %arg2[%c1, %c0_7, %c0_8] : memref<3x160x32xbf16, #tpu.memory_space<vmem>>, vector<1x160x32xbf16>
    %8 = vector.shape_cast %7 : vector<1x160x32xbf16> to vector<160x32xbf16>
    %cst_9 = arith.constant dense<0.000000e+00> : vector<4x32xf32>
    %9 = tpu.matmul %6, %8, %cst_9 {dimension_numbers = #tpu.dot_dimension_numbers<[1], [0], [0], [1], [0, 0, 1, 1], [], []>} : vector<4x160xbf16>, vector<160x32xbf16>, vector<4x32xf32> -> vector<4x32xf32>
    %10 = arith.addf %4, %9 : vector<4x32xf32>
    %c0_10 = arith.constant 0 : index
    %c1_11 = arith.constant 1 : index
    %c0_12 = arith.constant 0 : index
    %11 = vector.load %arg1[%c0_10, %c1_11, %c0_12] : memref<1x5x320xbf16, #tpu.memory_space<vmem>>, vector<1x4x160xbf16>
    %12 = vector.shape_cast %11 : vector<1x4x160xbf16> to vector<4x160xbf16>
    %c2 = arith.constant 2 : index
    %c0_13 = arith.constant 0 : index
    %c0_14 = arith.constant 0 : index
    %13 = vector.load %arg2[%c2, %c0_13, %c0_14] : memref<3x160x32xbf16, #tpu.memory_space<vmem>>, vector<1x160x32xbf16>
    %14 = vector.shape_cast %13 : vector<1x160x32xbf16> to vector<160x32xbf16>
    %cst_15 = arith.constant dense<0.000000e+00> : vector<4x32xf32>
    %15 = tpu.matmul %12, %14, %cst_15 {dimension_numbers = #tpu.dot_dimension_numbers<[1], [0], [0], [1], [0, 0, 1, 1], [], []>} : vector<4x160xbf16>, vector<160x32xbf16>, vector<4x32xf32> -> vector<4x32xf32>
    %16 = arith.addf %10, %15 : vector<4x32xf32>
    %17 = vector.extract_strided_slice %16 {offsets = [0, 0], sizes = [4, 16], strides = [1, 1]} : vector<4x32xf32> to vector<4x16xf32>
    %18 = vector.extract_strided_slice %16 {offsets = [0, 16], sizes = [4, 16], strides = [1, 1]} : vector<4x32xf32> to vector<4x16xf32>
    %19 = arith.maximumf %17, %18 : vector<4x16xf32>
    %c0_16 = arith.constant 0 : index
    %c0_17 = arith.constant 0 : index
    %c160_18 = arith.constant 160 : index
    %20 = vector.load %arg1[%c0_16, %c0_17, %c160_18] : memref<1x5x320xbf16, #tpu.memory_space<vmem>>, vector<1x4x160xbf16>
    %21 = vector.shape_cast %20 : vector<1x4x160xbf16> to vector<4x160xbf16>
    %c0_19 = arith.constant 0 : index
    %c0_20 = arith.constant 0 : index
    %c0_21 = arith.constant 0 : index
    %22 = vector.load %arg2[%c0_19, %c0_20, %c0_21] : memref<3x160x32xbf16, #tpu.memory_space<vmem>>, vector<1x160x32xbf16>
    %23 = vector.shape_cast %22 : vector<1x160x32xbf16> to vector<160x32xbf16>
    %cst_22 = arith.constant dense<0.000000e+00> : vector<4x32xf32>
    %24 = tpu.matmul %21, %23, %cst_22 {dimension_numbers = #tpu.dot_dimension_numbers<[1], [0], [0], [1], [0, 0, 1, 1], [], []>} : vector<4x160xbf16>, vector<160x32xbf16>, vector<4x32xf32> -> vector<4x32xf32>
    %c0_23 = arith.constant 0 : index
    %c1_24 = arith.constant 1 : index
    %c0_25 = arith.constant 0 : index
    %25 = vector.load %arg1[%c0_23, %c1_24, %c0_25] : memref<1x5x320xbf16, #tpu.memory_space<vmem>>, vector<1x4x160xbf16>
    %26 = vector.shape_cast %25 : vector<1x4x160xbf16> to vector<4x160xbf16>
    %c1_26 = arith.constant 1 : index
    %c0_27 = arith.constant 0 : index
    %c0_28 = arith.constant 0 : index
    %27 = vector.load %arg2[%c1_26, %c0_27, %c0_28] : memref<3x160x32xbf16, #tpu.memory_space<vmem>>, vector<1x160x32xbf16>
    %28 = vector.shape_cast %27 : vector<1x160x32xbf16> to vector<160x32xbf16>
    %cst_29 = arith.constant dense<0.000000e+00> : vector<4x32xf32>
    %29 = tpu.matmul %26, %28, %cst_29 {dimension_numbers = #tpu.dot_dimension_numbers<[1], [0], [0], [1], [0, 0, 1, 1], [], []>} : vector<4x160xbf16>, vector<160x32xbf16>, vector<4x32xf32> -> vector<4x32xf32>
    %30 = arith.addf %24, %29 : vector<4x32xf32>
    %c0_30 = arith.constant 0 : index
    %c1_31 = arith.constant 1 : index
    %c160_32 = arith.constant 160 : index
    %31 = vector.load %arg1[%c0_30, %c1_31, %c160_32] : memref<1x5x320xbf16, #tpu.memory_space<vmem>>, vector<1x4x160xbf16>
    %32 = vector.shape_cast %31 : vector<1x4x160xbf16> to vector<4x160xbf16>
    %c2_33 = arith.constant 2 : index
    %c0_34 = arith.constant 0 : index
    %c0_35 = arith.constant 0 : index
    %33 = vector.load %arg2[%c2_33, %c0_34, %c0_35] : memref<3x160x32xbf16, #tpu.memory_space<vmem>>, vector<1x160x32xbf16>
    %34 = vector.shape_cast %33 : vector<1x160x32xbf16> to vector<160x32xbf16>
    %cst_36 = arith.constant dense<0.000000e+00> : vector<4x32xf32>
    %35 = tpu.matmul %32, %34, %cst_36 {dimension_numbers = #tpu.dot_dimension_numbers<[1], [0], [0], [1], [0, 0, 1, 1], [], []>} : vector<4x160xbf16>, vector<160x32xbf16>, vector<4x32xf32> -> vector<4x32xf32>
    %36 = arith.addf %30, %35 : vector<4x32xf32>
    %37 = vector.extract_strided_slice %36 {offsets = [0, 0], sizes = [4, 16], strides = [1, 1]} : vector<4x32xf32> to vector<4x16xf32>
    %38 = vector.extract_strided_slice %36 {offsets = [0, 16], sizes = [4, 16], strides = [1, 1]} : vector<4x32xf32> to vector<4x16xf32>
    %39 = arith.maximumf %37, %38 : vector<4x16xf32>
    %40 = arith.maximumf %19, %39 : vector<4x16xf32>
    %c0_37 = arith.constant 0 : index
    %c0_38 = arith.constant 0 : index
    %41 = vector.load %arg3[%c0_37, %c0_38] : memref<1x16xf32, #tpu.memory_space<vmem>>, vector<1x16xf32>
    %42 = vector.broadcast %41 : vector<1x16xf32> to vector<4x16xf32>
    %43 = arith.addf %40, %42 : vector<4x16xf32>
    %cst_39 = arith.constant 0.000000e+00 : f32
    %44 = vector.broadcast %cst_39 : f32 to vector<4x16xf32>
    %45 = arith.maximumf %43, %44 : vector<4x16xf32>
    %46 = arith.truncf %45 : vector<4x16xf32> to vector<4x16xbf16>
    %c0_40 = arith.constant 0 : index
    %c0_41 = arith.constant 0 : index
    %c0_42 = arith.constant 0 : index
    %47 = vector.load %arg4[%c0_40, %c0_41, %c0_42] : memref<1x4x16xbf16, #tpu.memory_space<vmem>>, vector<1x4x16xbf16>
    %48 = vector.shape_cast %47 : vector<1x4x16xbf16> to vector<4x16xbf16>
    %49 = vector.shape_cast %46 : vector<4x16xbf16> to vector<1x4x16xbf16>
    tpu.vector_store %arg4[%c0_40, %c0_41, %c0_42], %49 {strides = array<i32>} : memref<1x4x16xbf16, #tpu.memory_space<vmem>>, vector<1x4x16xbf16>,
    return
  }
  func.func @transform_0(%arg0: i32) -> (i32, i32, i32) {
    %c0_i32 = arith.constant 0 : i32
    %c0_i32_0 = arith.constant 0 : i32
    %c0_i32_1 = arith.constant 0 : i32
    return %arg0, %c0_i32, %c0_i32_0 : i32, i32, i32
  }
  func.func @transform_1(%arg0: i32) -> (i32, i32, i32) {
    %c0_i32 = arith.constant 0 : i32
    %c0_i32_0 = arith.constant 0 : i32
    %c0_i32_1 = arith.constant 0 : i32
    %c0_i32_2 = arith.constant 0 : i32
    return %c0_i32, %c0_i32_0, %c0_i32_1 : i32, i32, i32
  }
  func.func @transform_2(%arg0: i32) -> (i32, i32) {
    %c0_i32 = arith.constant 0 : i32
    %c0_i32_0 = arith.constant 0 : i32
    %c0_i32_1 = arith.constant 0 : i32
    return %c0_i32, %c0_i32_0 : i32, i32
  }
  func.func @transform_3(%arg0: i32) -> (i32, i32, i32) {
    %c0_i32 = arith.constant 0 : i32
    %c0_i32_0 = arith.constant 0 : i32
    %c0_i32_1 = arith.constant 0 : i32
    return %arg0, %c0_i32, %c0_i32_0 : i32, i32, i32
  }
}

module attributes {stable_mosaic.version = 11 : i64} {
  func.func @_matmul_bias_act_kernel(%arg0: i32, %arg1: memref<8x16xbf16, #tpu.memory_space<vmem>>, %arg2: memref<16x256xbf16, #tpu.memory_space<vmem>>, %arg3: memref<1x256xf32, #tpu.memory_space<vmem>>, %arg4: memref<8x256xbf16, #tpu.memory_space<vmem>>) attributes {dimension_semantics = [#tpu.dimension_semantics<parallel>], iteration_bounds = array<i64: 1>, scalar_prefetch = 0 : i64, scratch_operands = 0 : i64, tpu.core_type = #tpu.core_type<tc>, window_params = [{transform_indices = @transform_0, window_bounds = array<i64: 8, 16>}, {pipeline_mode = #tpu.pipeline_mode<synchronous>, transform_indices = @transform_1, window_bounds = array<i64: 16, 256>}, {pipeline_mode = #tpu.pipeline_mode<synchronous>, transform_indices = @transform_2, window_bounds = array<i64: 1, 256>}, {transform_indices = @transform_3, window_bounds = array<i64: 8, 256>}]} {
    %c0 = arith.constant 0 : index
    %c0_0 = arith.constant 0 : index
    %0 = vector.load %arg1[%c0, %c0_0] : memref<8x16xbf16, #tpu.memory_space<vmem>>, vector<8x16xbf16>
    %c0_1 = arith.constant 0 : index
    %c0_2 = arith.constant 0 : index
    %1 = vector.load %arg2[%c0_1, %c0_2] : memref<16x256xbf16, #tpu.memory_space<vmem>>, vector<16x256xbf16>
    %cst = arith.constant dense<0.000000e+00> : vector<8x256xf32>
    %2 = tpu.matmul %0, %1, %cst {dimension_numbers = #tpu.dot_dimension_numbers<[1], [0], [0], [1], [0, 0, 1, 1], [], []>} : vector<8x16xbf16>, vector<16x256xbf16>, vector<8x256xf32> -> vector<8x256xf32>
    %c0_3 = arith.constant 0 : index
    %c0_4 = arith.constant 0 : index
    %3 = vector.load %arg3[%c0_3, %c0_4] : memref<1x256xf32, #tpu.memory_space<vmem>>, vector<1x256xf32>
    %4 = vector.broadcast %3 : vector<1x256xf32> to vector<8x256xf32>
    %5 = arith.addf %2, %4 : vector<8x256xf32>
    %cst_5 = arith.constant 0.000000e+00 : f32
    %6 = vector.broadcast %cst_5 : f32 to vector<8x256xf32>
    %7 = arith.maximumf %5, %6 : vector<8x256xf32>
    %8 = arith.truncf %7 : vector<8x256xf32> to vector<8x256xbf16>
    %c0_6 = arith.constant 0 : index
    %c0_7 = arith.constant 0 : index
    %9 = vector.load %arg4[%c0_6, %c0_7] : memref<8x256xbf16, #tpu.memory_space<vmem>>, vector<8x256xbf16>
    tpu.vector_store %arg4[%c0_6, %c0_7], %8 {strides = array<i32>} : memref<8x256xbf16, #tpu.memory_space<vmem>>, vector<8x256xbf16>,
    return
  }
  func.func @transform_0(%arg0: i32) -> (i32, i32) {
    %c0_i32 = arith.constant 0 : i32
    %c0_i32_0 = arith.constant 0 : i32
    return %arg0, %c0_i32 : i32, i32
  }
  func.func @transform_1(%arg0: i32) -> (i32, i32) {
    %c0_i32 = arith.constant 0 : i32
    %c0_i32_0 = arith.constant 0 : i32
    %c0_i32_1 = arith.constant 0 : i32
    return %c0_i32, %c0_i32_0 : i32, i32
  }
  func.func @transform_2(%arg0: i32) -> (i32, i32) {
    %c0_i32 = arith.constant 0 : i32
    %c0_i32_0 = arith.constant 0 : i32
    %c0_i32_1 = arith.constant 0 : i32
    return %c0_i32, %c0_i32_0 : i32, i32
  }
  func.func @transform_3(%arg0: i32) -> (i32, i32) {
    %c0_i32 = arith.constant 0 : i32
    %c0_i32_0 = arith.constant 0 : i32
    return %arg0, %c0_i32 : i32, i32
  }
}

module attributes {stable_mosaic.version = 11 : i64} {
  func.func @_matmul_bias_act_kernel(%arg0: i32, %arg1: memref<16x128xbf16, #tpu.memory_space<vmem>>, %arg2: memref<128x96xbf16, #tpu.memory_space<vmem>>, %arg3: memref<1x96xf32, #tpu.memory_space<vmem>>, %arg4: memref<16x96xf32, #tpu.memory_space<vmem>>) attributes {dimension_semantics = [#tpu.dimension_semantics<parallel>], iteration_bounds = array<i64: 1>, scalar_prefetch = 0 : i64, scratch_operands = 0 : i64, tpu.core_type = #tpu.core_type<tc>, window_params = [{transform_indices = @transform_0, window_bounds = array<i64: 16, 128>}, {pipeline_mode = #tpu.pipeline_mode<synchronous>, transform_indices = @transform_1, window_bounds = array<i64: 128, 96>}, {pipeline_mode = #tpu.pipeline_mode<synchronous>, transform_indices = @transform_2, window_bounds = array<i64: 1, 96>}, {transform_indices = @transform_3, window_bounds = array<i64: 16, 96>}]} {
    %c0 = arith.constant 0 : index
    %c0_0 = arith.constant 0 : index
    %0 = vector.load %arg1[%c0, %c0_0] : memref<16x128xbf16, #tpu.memory_space<vmem>>, vector<16x128xbf16>
    %c0_1 = arith.constant 0 : index
    %c0_2 = arith.constant 0 : index
    %1 = vector.load %arg2[%c0_1, %c0_2] : memref<128x96xbf16, #tpu.memory_space<vmem>>, vector<128x96xbf16>
    %cst = arith.constant dense<0.000000e+00> : vector<16x96xf32>
    %2 = tpu.matmul %0, %1, %cst {dimension_numbers = #tpu.dot_dimension_numbers<[1], [0], [0], [1], [0, 0, 1, 1], [], []>} : vector<16x128xbf16>, vector<128x96xbf16>, vector<16x96xf32> -> vector<16x96xf32>
    %c0_3 = arith.constant 0 : index
    %c0_4 = arith.constant 0 : index
    %3 = vector.load %arg3[%c0_3, %c0_4] : memref<1x96xf32, #tpu.memory_space<vmem>>, vector<1x96xf32>
    %4 = vector.broadcast %3 : vector<1x96xf32> to vector<16x96xf32>
    %5 = arith.addf %2, %4 : vector<16x96xf32>
    %6 = math.absf %5 : vector<16x96xf32>
    %cst_5 = arith.constant 0.000000e+00 : f32
    %7 = vector.broadcast %cst_5 : f32 to vector<16x96xf32>
    %8 = arith.subf %7, %6 : vector<16x96xf32>
    %9 = math.exp %8 : vector<16x96xf32>
    %cst_6 = arith.constant 1.000000e+00 : f32
    %10 = vector.broadcast %cst_6 : f32 to vector<16x96xf32>
    %11 = arith.addf %10, %9 : vector<16x96xf32>
    %cst_7 = arith.constant 1.000000e+00 : f32
    %12 = vector.broadcast %cst_7 : f32 to vector<16x96xf32>
    %13 = arith.divf %12, %11 : vector<16x96xf32>
    %cst_8 = arith.constant 0.000000e+00 : f32
    %14 = vector.broadcast %cst_8 : f32 to vector<16x96xf32>
    %15 = arith.cmpf oge, %5, %14 : vector<16x96xf32>
    %cst_9 = arith.constant 1.000000e+00 : f32
    %16 = vector.broadcast %cst_9 : f32 to vector<16x96xf32>
    %17 = arith.subf %16, %13 : vector<16x96xf32>
    %18 = arith.select %15, %13, %17 : vector<16x96xi1>, vector<16x96xf32>
    %c0_10 = arith.constant 0 : index
    %c0_11 = arith.constant 0 : index
    %19 = vector.load %arg4[%c0_10, %c0_11] : memref<16x96xf32, #tpu.memory_space<vmem>>, vector<16x96xf32>
    tpu.vector_store %arg4[%c0_10, %c0_11], %18 {strides = array<i32>} : memref<16x96xf32, #tpu.memory_space<vmem>>, vector<16x96xf32>,
    return
  }
  func.func @transform_0(%arg0: i32) -> (i32, i32) {
    %c0_i32 = arith.constant 0 : i32
    %c0_i32_0 = arith.constant 0 : i32
    return %arg0, %c0_i32 : i32, i32
  }
  func.func @transform_1(%arg0: i32) -> (i32, i32) {
    %c0_i32 = arith.constant 0 : i32
    %c0_i32_0 = arith.constant 0 : i32
    %c0_i32_1 = arith.constant 0 : i32
    return %c0_i32, %c0_i32_0 : i32, i32
  }
  func.func @transform_2(%arg0: i32) -> (i32, i32) {
    %c0_i32 = arith.constant 0 : i32
    %c0_i32_0 = arith.constant 0 : i32
    %c0_i32_1 = arith.constant 0 : i32
    return %c0_i32, %c0_i32_0 : i32, i32
  }
  func.func @transform_3(%arg0: i32) -> (i32, i32) {
    %c0_i32 = arith.constant 0 : i32
    %c0_i32_0 = arith.constant 0 : i32
    return %arg0, %c0_i32 : i32, i32
  }
}

</mosaic_0001>

<llo_original>
// kernel: tile.23
$region0: #{tile.23}
  #allocation0 [shape = 's32[1]{0}', space=sflag, size = 0x4, scoped, tag = 'scoped memory for tile.23']
  %s0 = inlined_call_operand.vmem [shape: f32[16], index: 0, kind: input, shape index: {}]
  %s1 = inlined_call_operand.vmem [shape: f32[8,16], index: 1, kind: output, shape index: {}]
  // Predicated region
  $region2: #{tile.23} parent=0 // pred_check
    _
  $region3: #{tile.23} parent=0 // pred_check_branch
    %3 = sbr.rel (0) target = $region5
  $region4: #{tile.23} parent=0 // pred_region
    _
  $region5: #{tile.23} parent=0 // pred_fallthru
    _
  %v4 = vld [vmem:[%s0] ss:$0 sm:$0xff]
  %5 = vst [vmem:[%s1] sm:$0xff] %v4

// kernel: tile.24
$region0: #{tile.24}
  %s0 = inlined_call_operand.vmem [shape: f32[8,16], index: 0, kind: input, shape index: {}]
  %s1 = inlined_call_operand.vmem [shape: f32[1,128], index: 1, kind: output, shape index: {}]
  $region1: #{tile.24} parent=0
    #allocation0 [shape = 'u8[4096]{0}', space=vmem, size = 0x1000, scoped, tag = 'scoped mem for output reshape']
    %v2 = vld [vmem:[%s0] sm:$0x1]
    %vm3 = vcmask 130048
    %4 = vst.msk [vmem:[#allocation0] sm:$0x1] %vm3, %v2
    %s5 = scalar_lea.vmem %s0, 7
    %v6 = vld [vmem:[%s5] sm:$0x1]
    %7 = vrot.lane.b32.xlu0 %v6, 112
    %v8 = vpop.permute.xlu0 %7
    %vm9 = vcmask 1048448
    %10 = vst.msk [vmem:[#allocation0] sm:$0x1] %vm9, %v8
    %s11 = scalar_lea.vmem %s0, 6
    %v12 = vld [vmem:[%s11] sm:$0x1]
    %13 = vrot.lane.b32.xlu0 %v12, 96
    %v14 = vpop.permute.xlu0 %13
    %vm15 = vcmask 917248
    %16 = vst.msk [vmem:[#allocation0] sm:$0x1] %vm15, %v14
    %s17 = scalar_lea.vmem %s0, 5
    %v18 = vld [vmem:[%s17] sm:$0x1]
    %19 = vrot.lane.b32.xlu0 %v18, 80
    %v20 = vpop.permute.xlu0 %19
    %vm21 = vcmask 786048
    %22 = vst.msk [vmem:[#allocation0] sm:$0x1] %vm21, %v20
    %s23 = scalar_lea.vmem %s0, 4
    %v24 = vld [vmem:[%s23] sm:$0x1]
    %25 = vrot.lane.b32.xlu0 %v24, 64
    %v26 = vpop.permute.xlu0 %25
    %vm27 = vcmask 654848
    %28 = vst.msk [vmem:[#allocation0] sm:$0x1] %vm27, %v26
    %s29 = scalar_lea.vmem %s0, 3
    %v30 = vld [vmem:[%s29] sm:$0x1]
    %31 = vrot.lane.b32.xlu0 %v30, 48
    %v32 = vpop.permute.xlu0 %31
    %vm33 = vcmask 523648
    %34 = vst.msk [vmem:[#allocation0] sm:$0x1] %vm33, %v32
    %s35 = scalar_lea.vmem %s0, 2
    %v36 = vld [vmem:[%s35] sm:$0x1]
    %37 = vrot.lane.b32.xlu0 %v36, 32
    %v38 = vpop.permute.xlu0 %37
    %vm39 = vcmask 392448
    %40 = vst.msk [vmem:[#allocation0] sm:$0x1] %vm39, %v38
    %s41 = scalar_lea.vmem %s0, 1
    %v42 = vld [vmem:[%s41] sm:$0x1]
    %43 = vrot.lane.b32.xlu0 %v42, 16
    %v44 = vpop.permute.xlu0 %43
    %vm45 = vcmask 261248
    %46 = vst.msk [vmem:[#allocation0] sm:$0x1] %vm45, %v44
    %s48 = ssub.s32 2, 1
    %v49 = vld [vmem:[#allocation0] sm:%s48]
    %s51 = ssub.s32 2, 1
    %52 = vst [vmem:[%s1] sm:%s51] %v49

// kernel: autoencoder_forward.4
$region0: #{autoencoder_forward.4}
  #allocation0 [shape = 'u32[]', space=smem, size = 0x4, offset = 0x4, fixed_abs, tag = 'smem constant byte address 0x4 - core index']
  #allocation1 [shape = 'u32[72,128]{1,0:T(1,128)}', space=vmem, size = 0x9000, scoped, tag = 'internal scratch']
  %s0 = inlined_call_operand.vmem [shape: bf16[2,9,108], index: 0, kind: input, shape index: {}]
  %s1 = inlined_call_operand.vmem [shape: bf16[3,54,256], index: 1, kind: input, shape index: {}]
  %s2 = inlined_call_operand.vmem [shape: f32[1,128], index: 2, kind: input, shape index: {}]
  %s3 = inlined_call_operand.vmem [shape: bf16[2,8,128], index: 3, kind: output, shape index: {}]
  %s4 = sld [smem:[#allocation0]]
  $region45: #{autoencoder_forward.4} parent=0
    _
  %s6 = ssub.s32 1, %s4
  %s7 = scalar_select 0, %s6, %s4
  loop: start=0, step=1, limit=4
  $region2: #{autoencoder_forward.4} parent=0 // loop_pre_header
    _
  $region3: #{autoencoder_forward.4} parent=0 // loop_header
    %s9 = sphi 0, %s13
    %p10 = scmp.ge.s32.totalorder %s9, 4
    %s19 = sphi 0, %s21
    %s22 = sphi 0, %s19
    %s23 = sphi 0, %s22
    %s39 = sphi 0, %s23
    %s43 = sphi 0, %s43
    %s45 = sphi 0, %s43
    %s46 = sphi 0, %s45
    %s60 = sphi 0, %s46
    %s64 = sphi 0, %s64
    %s66 = sphi 0, %s64
    %s67 = sphi 0, %s66
    %s81 = sphi 0, %s67
    %s87 = sphi 0, %s89
    %s90 = sphi 0, %s87
    %s91 = sphi 0, %s90
    %s107 = sphi 0, %s91
  $region4: #{autoencoder_forward.4} parent=0 // loop_header_branch
    %12 = sbr.rel (%p10) target = $region8
  $region5: #{autoencoder_forward.4} parent=0 // loop_body
    %s14 = ssub.s32 %s9, 1
    %s15 = ssub.s32 %s9, 2
    %s16 = sadd.s32 %s9, 1
    %s17 = ssub.s32 %s9, %s16
    %p18 = scmp.eq.s32.totalorder %s17, 0
    %s20 = sadd.s32 %s19, 1
    %s21 = scalar_select %p18, %s19, %s20
    %p24 = pneg %p18
    %p25 = scmp.eq.s32.totalorder %s9, 1
    %p26 = por %p24, %p25
    %p27 = scmp.ne.s32.totalorder %s19, %s22
    %p28 = scmp.eq.s32.totalorder %s9, 0
    %p29 = por %p27, %p28
    %p30 = scmp.ne.s32.totalorder %s19, %s22
    %p31 = scmp.eq.s32.totalorder %s14, 1
    %p32 = por %p30, %p31
    %p33 = scmp.ne.s32.totalorder %s22, %s23
    %p34 = scmp.eq.s32.totalorder %s14, 0
    %p35 = por %p33, %p34
    %p36 = scmp.ne.s32.totalorder %s22, %s23
    %p37 = scmp.eq.s32.totalorder %s15, 1
    %p38 = por %p36, %p37
    %p40 = scmp.ne.s32.totalorder %s23, %s39
    %p41 = scmp.eq.s32.totalorder %s15, 0
    %p42 = por %p40, %p41
    %s44 = sadd.s32 %s43, 1
    %p47 = scmp.eq.s32.totalorder %s9, 1
    %p48 = scmp.ne.s32.totalorder %s43, %s45
    %p49 = scmp.eq.s32.totalorder %s9, 0
    %p50 = por %p48, %p49
    %p51 = scmp.ne.s32.totalorder %s43, %s45
    %p52 = scmp.eq.s32.totalorder %s14, 1
    %p53 = por %p51, %p52
    %p54 = scmp.ne.s32.totalorder %s45, %s46
    %p55 = scmp.eq.s32.totalorder %s14, 0
    %p56 = por %p54, %p55
    %p57 = scmp.ne.s32.totalorder %s45, %s46
    %p58 = scmp.eq.s32.totalorder %s15, 1
    %p59 = por %p57, %p58
    %p61 = scmp.ne.s32.totalorder %s46, %s60
    %p62 = scmp.eq.s32.totalorder %s15, 0
    %p63 = por %p61, %p62
    %s65 = sadd.s32 %s64, 1
    %p68 = scmp.eq.s32.totalorder %s9, 1
    %p69 = scmp.ne.s32.totalorder %s64, %s66
    %p70 = scmp.eq.s32.totalorder %s9, 0
    %p71 = por %p69, %p70
    %p72 = scmp.ne.s32.totalorder %s64, %s66
    %p73 = scmp.eq.s32.totalorder %s14, 1
    %p74 = por %p72, %p73
    %p75 = scmp.ne.s32.totalorder %s66, %s67
    %p76 = scmp.eq.s32.totalorder %s14, 0
    %p77 = por %p75, %p76
    %p78 = scmp.ne.s32.totalorder %s66, %s67
    %p79 = scmp.eq.s32.totalorder %s15, 1
    %p80 = por %p78, %p79
    %p82 = scmp.ne.s32.totalorder %s67, %s81
    %p83 = scmp.eq.s32.totalorder %s15, 0
    %p84 = por %p82, %p83
    %s85 = ssub.s32 %s9, %s16
    %p86 = scmp.eq.s32.totalorder %s85, 0
    %s88 = sadd.s32 %s87, 1
    %s89 = scalar_select %p86, %s87, %s88
    %p92 = pneg %p86
    %p93 = scmp.eq.s32.totalorder %s9, 1
    %p94 = por %p92, %p93
    %p95 = scmp.ne.s32.totalorder %s87, %s90
    %p96 = scmp.eq.s32.totalorder %s9, 0
    %p97 = por %p95, %p96
    %p98 = scmp.ne.s32.totalorder %s87, %s90
    %p99 = scmp.eq.s32.totalorder %s14, 1
    %p100 = por %p98, %p99
    %p101 = scmp.ne.s32.totalorder %s90, %s91
    %p102 = scmp.eq.s32.totalorder %s14, 0
    %p103 = por %p101, %p102
    %p104 = scmp.ne.s32.totalorder %s90, %s91
    %p105 = scmp.eq.s32.totalorder %s15, 1
    %p106 = por %p104, %p105
    %p108 = scmp.ne.s32.totalorder %s91, %s107
    %p109 = scmp.eq.s32.totalorder %s15, 0
    %p110 = por %p108, %p109
    %p111 = scmp.le.s32.totalorder 1, %s9
    %p112 = scmp.lt.s32.totalorder %s9, 3
    %p113 = pnand %p111, %p112
    %p114 = pneg %p113
    // Predicated region
    $region9: #{autoencoder_forward.4} parent=5 // pred_check
      _
    $region10: #{autoencoder_forward.4} parent=5 // pred_check_branch
      %116 = sbr.rel (%p113) target = $region12
    $region11: #{autoencoder_forward.4} parent=5 // pred_region
      %s117 = ssub.s32 %s9, 1
      // Predicated region
      $region13: #{autoencoder_forward.4} parent=11 // pred_check
        %p118 = pneg %p56
      $region14: #{autoencoder_forward.4} parent=11 // pred_check_branch
        %120 = sbr.rel (%p118) target = $region16
      $region15: #{autoencoder_forward.4} parent=11 // pred_region
        _
      $region16: #{autoencoder_forward.4} parent=11 // pred_fallthru
        _
      // Predicated region
      $region17: #{autoencoder_forward.4} parent=11 // pred_check
        %p121 = pneg %p77
      $region18: #{autoencoder_forward.4} parent=11 // pred_check_branch
        %123 = sbr.rel (%p121) target = $region20
      $region19: #{autoencoder_forward.4} parent=11 // pred_region
        _
      $region20: #{autoencoder_forward.4} parent=11 // pred_fallthru
        _
    $region12: #{autoencoder_forward.4} parent=5 // pred_fallthru
      _
    %p124 = scmp.lt.s32.totalorder %s9, 2
    // Predicated region
    $region21: #{autoencoder_forward.4} parent=5 // pred_check
      %p125 = pneg %p124
    $region22: #{autoencoder_forward.4} parent=5 // pred_check_branch
      %127 = sbr.rel (%p125) target = $region24
    $region23: #{autoencoder_forward.4} parent=5 // pred_region
      // Predicated region
      $region25: #{autoencoder_forward.4} parent=23 // pred_check
        %p128 = pneg %p29
      $region26: #{autoencoder_forward.4} parent=23 // pred_check_branch
        %130 = sbr.rel (%p128) target = $region28
      $region27: #{autoencoder_forward.4} parent=23 // pred_region
        %p131 = scmp.lt.s32.totalorder %s9, 1
        %s132 = scalar_select %p131, %s9, 1
        %s133 = smul.addr %s132, 2
        %s134 = smul.addr %s133, 4
        %s135 = scalar_lea.vmem %s0, %s134
      $region28: #{autoencoder_forward.4} parent=23 // pred_fallthru
        _
    $region24: #{autoencoder_forward.4} parent=5 // pred_fallthru
      _
    %p136 = scmp.le.s32.totalorder 1, %s9
    %p137 = scmp.lt.s32.totalorder %s9, 3
    %p138 = pnand %p136, %p137
    %p139 = pneg %p138
    // Predicated region
    $region29: #{autoencoder_forward.4} parent=5 // pred_check
      _
    $region30: #{autoencoder_forward.4} parent=5 // pred_check_branch
      %141 = sbr.rel (%p138) target = $region32
    $region31: #{autoencoder_forward.4} parent=5 // pred_region
      %s142 = ssub.s32 %s9, 1
      %p143 = scmp.lt.s32.totalorder %s14, 1
      %s144 = scalar_select %p143, %s14, 1
      %s145 = smul.addr %s144, 2
      %s146 = smul.addr %s145, 4
      %s147 = scalar_lea.vmem %s0, %s146
      %p148 = pneg %p35
      %p149 = pneg %p32
      %p150 = pneg %p56
      %p151 = pneg %p53
      %p152 = pneg %p77
      %p153 = pneg %p74
      %p154 = pneg %p103
      %p155 = pneg %p100
      %p156 = scmp.lt.s32.totalorder %s14, 1
      %s157 = scalar_select %p156, %s14, 1
      %s158 = smul.addr %s157, 4
      %s159 = scalar_lea.vmem %s3, %s158
      %p160 = scmp.lt.s32.totalorder %s14, 1
      %s161 = scalar_select %p160, %s14, 1
      %s162 = smul.addr %s161, 2
      %s163 = smul.addr %s162, 4
      %s164 = scalar_lea.vmem %s0, %s163
      %p165 = scmp.lt.s32.totalorder %s14, 1
      %s166 = scalar_select %p165, %s14, 1
      %s167 = smul.addr %s166, 4
      %s168 = scalar_lea.vmem %s3, %s167
      %v170 = vld [vmem:[%s164] sm:$0xf]
      %v171 = vld [vmem:[%s1] sm:$0xff]
      %v172 = vld [vmem:[%s1 + $0x8] sm:$0xff]
      %v173 = vld [vmem:[%s1 + $0x10] sm:$0xff]
      %v174 = vld [vmem:[%s1 + $0x18] sm:$0xff]
      %v175 = vld [vmem:[%s1 + $0x20] sm:$0xff]
      %v176 = vld [vmem:[%s1 + $0x28] sm:$0xff]
      %v177 = vld [vmem:[%s1 + $0x30] sm:$0x77]
      %s178 = scalar_lea.vmem %s1, 56
      %v179 = vld [vmem:[%s178] sm:$0xff]
      %v180 = vld [vmem:[%s178 + $0x8] sm:$0xff]
      %v181 = vld [vmem:[%s178 + $0x10] sm:$0xff]
      %v182 = vld [vmem:[%s178 + $0x18] sm:$0xff]
      %v183 = vld [vmem:[%s178 + $0x20] sm:$0xff]
      %v184 = vld [vmem:[%s178 + $0x28] sm:$0xff]
      %v185 = vld [vmem:[%s178 + $0x30] sm:$0x77]
      %v187 = vunpack.c.l.b16 %v170
      %v188 = vpack.c.b16 %v187, %v187
      %189 = vrot.lane.b32.xlu0 %v188, 74
      %v190 = vpop.permute.xlu0 %189
      %v198 = vunpack.c.l.b16 %v179
      %v199 = vunpack.c.h.b16 %v179
      %v200 = vunpack.c.l.b16 %v180
      %v201 = vunpack.c.h.b16 %v180
      %v202 = vunpack.c.l.b16 %v181
      %v203 = vunpack.c.h.b16 %v181
      %v204 = vunpack.c.l.b16 %v182
      %v205 = vunpack.c.h.b16 %v182
      %v206 = vunpack.c.l.b16 %v183
      %v207 = vunpack.c.h.b16 %v183
      %v208 = vunpack.c.l.b16 %v184
      %v209 = vunpack.c.h.b16 %v184
      %v210 = vunpack.c.l.b16 %v185
      %v211 = vunpack.c.h.b16 %v185
      %v212 = vpack.c.b16 %v200, %v198
      %v213 = vpack.c.b16 %v201, %v199
      %v214 = vpack.c.b16 %v204, %v202
      %v215 = vpack.c.b16 %v205, %v203
      %v216 = vpack.c.b16 %v208, %v206
      %v217 = vpack.c.b16 %v209, %v207
      %v218 = vpack.c.b16 %v210, %v210
      %v219 = vpack.c.b16 %v211, %v211
      %vm226 = vcmask 441344
      %v228 = vsel %vm226, %v190, 0
      %vm230 = vcmask 1042432
      %v232 = vsel %vm230, %v218, 0
      %v235 = vsel %vm230, %v219, 0
      %237 = vmatpush.bf16.msra.mxu0 0
      %238 = vmatpush.bf16.msra.mxu0 0
      %239 = vmatpush.bf16.msra.mxu0 0
      %240 = vmatpush.bf16.msra.mxu0 0
      %241 = vmatpush.bf16.msra.mxu0 %v232
      %242 = vmatpush.bf16.msra.mxu0 %v216
      %243 = vmatpush.bf16.msra.mxu0 %v214
      %244 = vmatpush.bf16.msra.mxu0 %v212
      %245 = vmatmul.bf16.gmra.mxu0 %v228
      %v246 = vpop.f32.mrf.mxu0
      %v247 = vadd.f32 0.0, %v246
      %v248 = vpop.f32.mrf.mxu0
      %249 = vdwg.mxu0
      %250 = vmatpush.bf16.msra.mxu0 0
      %251 = vmatpush.bf16.msra.mxu0 0
      %252 = vmatpush.bf16.msra.mxu0 0
      %253 = vmatpush.bf16.msra.mxu0 0
      %254 = vmatpush.bf16.msra.mxu0 %v235
      %255 = vmatpush.bf16.msra.mxu0 %v217
      %256 = vmatpush.bf16.msra.mxu0 %v215
      %257 = vmatpush.bf16.msra.mxu0 %v213
      %258 = vmatmul.bf16.gmra.mxu0 %v228
      %v259 = vpop.f32.mrf.mxu0
      %v260 = vadd.f32 0.0, %v259
      %v261 = vpop.f32.mrf.mxu0
      %262 = vdwg.mxu0
      %v270 = vunpack.c.l.b16 %v171
      %v271 = vunpack.c.h.b16 %v171
      %v272 = vunpack.c.l.b16 %v172
      %v273 = vunpack.c.h.b16 %v172
      %v274 = vunpack.c.l.b16 %v173
      %v275 = vunpack.c.h.b16 %v173
      %v276 = vunpack.c.l.b16 %v174
      %v277 = vunpack.c.h.b16 %v174
      %v278 = vunpack.c.l.b16 %v175
      %v279 = vunpack.c.h.b16 %v175
      %v280 = vunpack.c.l.b16 %v176
      %v281 = vunpack.c.h.b16 %v176
      %v282 = vunpack.c.l.b16 %v177
      %v283 = vunpack.c.h.b16 %v177
      %v284 = vpack.c.b16 %v272, %v270
      %v285 = vpack.c.b16 %v273, %v271
      %v286 = vpack.c.b16 %v276, %v274
      %v287 = vpack.c.b16 %v277, %v275
      %v288 = vpack.c.b16 %v280, %v278
      %v289 = vpack.c.b16 %v281, %v279
      %v290 = vpack.c.b16 %v282, %v282
      %v291 = vpack.c.b16 %v283, %v283
      %v299 = vsel %vm226, %v170, 0
      %v302 = vsel %vm230, %v290, 0
      %v305 = vsel %vm230, %v291, 0
      %307 = vmatpush.bf16.msra.mxu0 0
      %308 = vmatpush.bf16.msra.mxu0 0
      %309 = vmatpush.bf16.msra.mxu0 0
      %310 = vmatpush.bf16.msra.mxu0 0
      %311 = vmatpush.bf16.msra.mxu0 %v302
      %312 = vmatpush.bf16.msra.mxu0 %v288
      %313 = vmatpush.bf16.msra.mxu0 %v286
      %314 = vmatpush.bf16.msra.mxu0 %v284
      %315 = vmatmul.bf16.gmra.mxu0 %v299
      %v316 = vpop.f32.mrf.mxu0
      %v317 = vadd.f32 %v247, %v316
      %v318 = vpop.f32.mrf.mxu0
      %319 = vdwg.mxu0
      %320 = vmatpush.bf16.msra.mxu0 0
      %321 = vmatpush.bf16.msra.mxu0 0
      %322 = vmatpush.bf16.msra.mxu0 0
      %323 = vmatpush.bf16.msra.mxu0 0
      %324 = vmatpush.bf16.msra.mxu0 %v305
      %325 = vmatpush.bf16.msra.mxu0 %v289
      %326 = vmatpush.bf16.msra.mxu0 %v287
      %327 = vmatpush.bf16.msra.mxu0 %v285
      %328 = vmatmul.bf16.gmra.mxu0 %v299
      %v329 = vpop.f32.mrf.mxu0
      %v330 = vadd.f32 %v260, %v329
      %v331 = vpop.f32.mrf.mxu0
      %332 = vdwg.mxu0
      %v333 = vld [vmem:[%s164] sm:$0xf]
      %v334 = vld [vmem:[%s164 + $0x4] sm:$0x1]
      %s335 = scalar_lea.vmem %s1, 112
      %v336 = vld [vmem:[%s335] sm:$0xff]
      %v337 = vld [vmem:[%s335 + $0x8] sm:$0xff]
      %v338 = vld [vmem:[%s335 + $0x10] sm:$0xff]
      %v339 = vld [vmem:[%s335 + $0x18] sm:$0xff]
      %v340 = vld [vmem:[%s335 + $0x20] sm:$0xff]
      %v341 = vld [vmem:[%s335 + $0x28] sm:$0xff]
      %v342 = vld [vmem:[%s335 + $0x30] sm:$0x77]
      %v345 = vunpack.c.l.b16 %v333
      %v346 = vunpack.c.l.b16 %v334
      %v347 = vpack.c.b16 %v346, %v345
      %v349 = vshrl.u32 %v347, 16
      %v351 = vshll.u32 %v347, 16
      %v353 = vrot.slane %v351, 1
      %v354 = vor.u32 %v349, %v353
      %v362 = vunpack.c.l.b16 %v336
      %v363 = vunpack.c.h.b16 %v336
      %v364 = vunpack.c.l.b16 %v337
      %v365 = vunpack.c.h.b16 %v337
      %v366 = vunpack.c.l.b16 %v338
      %v367 = vunpack.c.h.b16 %v338
      %v368 = vunpack.c.l.b16 %v339
      %v369 = vunpack.c.h.b16 %v339
      %v370 = vunpack.c.l.b16 %v340
      %v371 = vunpack.c.h.b16 %v340
      %v372 = vunpack.c.l.b16 %v341
      %v373 = vunpack.c.h.b16 %v341
      %v374 = vunpack.c.l.b16 %v342
      %v375 = vunpack.c.h.b16 %v342
      %v376 = vpack.c.b16 %v364, %v362
      %v377 = vpack.c.b16 %v365, %v363
      %v378 = vpack.c.b16 %v368, %v366
      %v379 = vpack.c.b16 %v369, %v367
      %v380 = vpack.c.b16 %v372, %v370
      %v381 = vpack.c.b16 %v373, %v371
      %v382 = vpack.c.b16 %v374, %v374
      %v383 = vpack.c.b16 %v375, %v375
      %v391 = vsel %vm226, %v354, 0
      %v394 = vsel %vm230, %v382, 0
      %v397 = vsel %vm230, %v383, 0
      %399 = vmatpush.bf16.msra.mxu0 0
      %400 = vmatpush.bf16.msra.mxu0 0
      %401 = vmatpush.bf16.msra.mxu0 0
      %402 = vmatpush.bf16.msra.mxu0 0
      %403 = vmatpush.bf16.msra.mxu0 %v394
      %404 = vmatpush.bf16.msra.mxu0 %v380
      %405 = vmatpush.bf16.msra.mxu0 %v378
      %406 = vmatpush.bf16.msra.mxu0 %v376
      %407 = vmatmul.bf16.gmra.mxu0 %v391
      %v408 = vpop.f32.mrf.mxu0
      %v409 = vadd.f32 0.0, %v408
      %v410 = vpop.f32.mrf.mxu0
      %411 = vdwg.mxu0
      %412 = vmatpush.bf16.msra.mxu0 0
      %413 = vmatpush.bf16.msra.mxu0 0
      %414 = vmatpush.bf16.msra.mxu0 0
      %415 = vmatpush.bf16.msra.mxu0 0
      %416 = vmatpush.bf16.msra.mxu0 %v397
      %417 = vmatpush.bf16.msra.mxu0 %v381
      %418 = vmatpush.bf16.msra.mxu0 %v379
      %419 = vmatpush.bf16.msra.mxu0 %v377
      %420 = vmatmul.bf16.gmra.mxu0 %v391
      %v421 = vpop.f32.mrf.mxu0
      %v422 = vadd.f32 0.0, %v421
      %v423 = vpop.f32.mrf.mxu0
      %424 = vdwg.mxu0
      %v425 = vadd.f32 %v317, %v409
      %v426 = vadd.f32 %v330, %v422
      %v427 = vmax.f32 %v425, %v426
      %428 = vmatpush.bf16.msra.mxu0 0
      %429 = vmatpush.bf16.msra.mxu0 0
      %430 = vmatpush.bf16.msra.mxu0 0
      %431 = vmatpush.bf16.msra.mxu0 0
      %432 = vmatpush.bf16.msra.mxu0 %v232
      %433 = vmatpush.bf16.msra.mxu0 %v216
      %434 = vmatpush.bf16.msra.mxu0 %v214
      %435 = vmatpush.bf16.msra.mxu0 %v212
      %436 = vmatmul.bf16.gmra.mxu0 %v391
      %v437 = vpop.f32.mrf.mxu0
      %v438 = vadd.f32 0.0, %v437
      %v439 = vpop.f32.mrf.mxu0
      %440 = vdwg.mxu0
      %441 = vmatpush.bf16.msra.mxu0 0
      %442 = vmatpush.bf16.msra.mxu0 0
      %443 = vmatpush.bf16.msra.mxu0 0
      %444 = vmatpush.bf16.msra.mxu0 0
      %445 = vmatpush.bf16.msra.mxu0 %v235
      %446 = vmatpush.bf16.msra.mxu0 %v217
      %447 = vmatpush.bf16.msra.mxu0 %v215
      %448 = vmatpush.bf16.msra.mxu0 %v213
      %449 = vmatmul.bf16.gmra.mxu0 %v391
      %v450 = vpop.f32.mrf.mxu0
      %v451 = vadd.f32 0.0, %v450
      %v452 = vpop.f32.mrf.mxu0
      %453 = vdwg.mxu0
      %454 = vmatpush.bf16.msra.mxu0 0
      %455 = vmatpush.bf16.msra.mxu0 0
      %456 = vmatpush.bf16.msra.mxu0 0
      %457 = vmatpush.bf16.msra.mxu0 0
      %458 = vmatpush.bf16.msra.mxu0 %v302
      %459 = vmatpush.bf16.msra.mxu0 %v288
      %460 = vmatpush.bf16.msra.mxu0 %v286
      %461 = vmatpush.bf16.msra.mxu0 %v284
      %462 = vmatmul.bf16.gmra.mxu0 %v228
      %v463 = vpop.f32.mrf.mxu0
      %v464 = vadd.f32 %v438, %v463
      %v465 = vpop.f32.mrf.mxu0
      %466 = vdwg.mxu0
      %467 = vmatpush.bf16.msra.mxu0 0
      %468 = vmatpush.bf16.msra.mxu0 0
      %469 = vmatpush.bf16.msra.mxu0 0
      %470 = vmatpush.bf16.msra.mxu0 0
      %471 = vmatpush.bf16.msra.mxu0 %v305
      %472 = vmatpush.bf16.msra.mxu0 %v289
      %473 = vmatpush.bf16.msra.mxu0 %v287
      %474 = vmatpush.bf16.msra.mxu0 %v285
      %475 = vmatmul.bf16.gmra.mxu0 %v228
      %v476 = vpop.f32.mrf.mxu0
      %v477 = vadd.f32 %v451, %v476
      %v478 = vpop.f32.mrf.mxu0
      %479 = vdwg.mxu0
      %480 = vrot.lane.b32.xlu0 %v354, 74
      %v481 = vpop.permute.xlu0 %480
      %v483 = vsel %vm226, %v481, 0
      %485 = vmatpush.bf16.msra.mxu0 0
      %486 = vmatpush.bf16.msra.mxu0 0
      %487 = vmatpush.bf16.msra.mxu0 0
      %488 = vmatpush.bf16.msra.mxu0 0
      %489 = vmatpush.bf16.msra.mxu0 %v394
      %490 = vmatpush.bf16.msra.mxu0 %v380
      %491 = vmatpush.bf16.msra.mxu0 %v378
      %492 = vmatpush.bf16.msra.mxu0 %v376
      %493 = vmatmul.bf16.gmra.mxu0 %v483
      %v494 = vpop.f32.mrf.mxu0
      %v495 = vadd.f32 0.0, %v494
      %v496 = vpop.f32.mrf.mxu0
      %497 = vdwg.mxu0
      %498 = vmatpush.bf16.msra.mxu0 0
      %499 = vmatpush.bf16.msra.mxu0 0
      %500 = vmatpush.bf16.msra.mxu0 0
      %501 = vmatpush.bf16.msra.mxu0 0
      %502 = vmatpush.bf16.msra.mxu0 %v397
      %503 = vmatpush.bf16.msra.mxu0 %v381
      %504 = vmatpush.bf16.msra.mxu0 %v379
      %505 = vmatpush.bf16.msra.mxu0 %v377
      %506 = vmatmul.bf16.gmra.mxu0 %v483
      %v507 = vpop.f32.mrf.mxu0
      %v508 = vadd.f32 0.0, %v507
      %v509 = vpop.f32.mrf.mxu0
      %510 = vdwg.mxu0
      %v511 = vadd.f32 %v464, %v495
      %v512 = vadd.f32 %v477, %v508
      %v513 = vmax.f32 %v511, %v512
      %v514 = vmax.f32 %v427, %v513
      %v515 = vld [vmem:[%s2] sm:$0x1]
      %v517 = vperm.slane %v515, 0
      %v519 = vadd.f32 %v514, %v517
      %v520 = vmax.f32 %v519, 0.0
      %v521 = vpack.c.bf16 %v520, %v520
      %522 = vst [vmem:[%s168] sm:$0xf] %v521
      %p523 = scmp.lt.s32.totalorder %s14, 1
      %s524 = scalar_select %p523, %s14, 1
      %s525 = smul.addr %s524, 4
      %s526 = scalar_lea.vmem %s3, %s525
      // Predicated region
      $region33: #{autoencoder_forward.4} parent=31 // pred_check
        %p527 = pneg %p100
      $region34: #{autoencoder_forward.4} parent=31 // pred_check_branch
        %529 = sbr.rel (%p527) target = $region36
      $region35: #{autoencoder_forward.4} parent=31 // pred_region
        _
      $region36: #{autoencoder_forward.4} parent=31 // pred_fallthru
        _
    $region32: #{autoencoder_forward.4} parent=5 // pred_fallthru
      _
    %p530 = scmp.le.s32.totalorder 2, %s9
    // Predicated region
    $region37: #{autoencoder_forward.4} parent=5 // pred_check
      %p531 = pneg %p530
    $region38: #{autoencoder_forward.4} parent=5 // pred_check_branch
      %533 = sbr.rel (%p531) target = $region40
    $region39: #{autoencoder_forward.4} parent=5 // pred_region
      %s534 = ssub.s32 %s9, 2
      // Predicated region
      $region41: #{autoencoder_forward.4} parent=39 // pred_check
        %p535 = pneg %p106
      $region42: #{autoencoder_forward.4} parent=39 // pred_check_branch
        %537 = sbr.rel (%p535) target = $region44
      $region43: #{autoencoder_forward.4} parent=39 // pred_region
        %p538 = scmp.lt.s32.totalorder %s15, 1
        %s539 = scalar_select %p538, %s15, 1
        %s540 = smul.addr %s539, 4
        %s541 = scalar_lea.vmem %s3, %s540
      $region44: #{autoencoder_forward.4} parent=39 // pred_fallthru
        _
    $region40: #{autoencoder_forward.4} parent=5 // pred_fallthru
      _
  $region6: #{autoencoder_forward.4} parent=0 // loop_footer
    %s13 = sadd.s32 1, %s9
  $region7: #{autoencoder_forward.4} parent=0 // loop_footer_branch
    %8 = sbr.rel target = $region3
  $region8: #{autoencoder_forward.4} parent=0 // loop_exit
    _

// kernel: tile.28
$region0: #{tile.28}
  #allocation0 [shape = 's32[1]{0}', space=sflag, size = 0x4, scoped, tag = 'scoped memory for tile.28']
  %s0 = inlined_call_operand.vmem [shape: f32[4], index: 0, kind: input, shape index: {}]
  %s1 = inlined_call_operand.vmem [shape: f32[4,4], index: 1, kind: output, shape index: {}]
  // Predicated region
  $region2: #{tile.28} parent=0 // pred_check
    _
  $region3: #{tile.28} parent=0 // pred_check_branch
    %3 = sbr.rel (0) target = $region5
  $region4: #{tile.28} parent=0 // pred_region
    _
  $region5: #{tile.28} parent=0 // pred_fallthru
    _
  %v4 = vld [vmem:[%s0] ss:$0 sm:$0xff]
  %5 = vst [vmem:[%s1] sm:$0xf] %v4

// kernel: tile.29
$region0: #{tile.29}
  %s0 = inlined_call_operand.vmem [shape: f32[4,4], index: 0, kind: input, shape index: {}]
  %s1 = inlined_call_operand.vmem [shape: f32[1,16], index: 1, kind: output, shape index: {}]
  $region1: #{tile.29} parent=0
    #allocation0 [shape = 'u8[4096]{0}', space=vmem, size = 0x1000, scoped, tag = 'scoped mem for output reshape']
    #allocation1 [shape = 'u8[4096]{0}', space=vmem, size = 0x1000, scoped, tag = 'scoped mem for input reshape']
    %s3 = ssub.s32 16, 1
    %v4 = vld [vmem:[%s0] sm:%s3]
    %5 = vst [vmem:[#allocation1] sm:%s3] %v4
    %v6 = vld [vmem:[#allocation1] sm:$0x1]
    %vm7 = vcmask 31744
    %8 = vst.msk [vmem:[#allocation0] sm:$0x1] %vm7, %v6
    %s9 = scalar_lea.vmem [#allocation1], 3
    %v10 = vld [vmem:[%s9] sm:$0x1]
    %11 = vrot.lane.b32.xlu0 %v10, 12
    %v12 = vpop.permute.xlu0 %11
    %vm13 = vcmask 130144
    %14 = vst.msk [vmem:[#allocation0] sm:$0x1] %vm13, %v12
    %s15 = scalar_lea.vmem [#allocation1], 2
    %v16 = vld [vmem:[%s15] sm:$0x1]
    %17 = vrot.lane.b32.xlu0 %v16, 8
    %v18 = vpop.permute.xlu0 %17
    %vm19 = vcmask 97344
    %20 = vst.msk [vmem:[#allocation0] sm:$0x1] %vm19, %v18
    %s21 = scalar_lea.vmem [#allocation1], 1
    %v22 = vld [vmem:[%s21] sm:$0x1]
    %23 = vrot.lane.b32.xlu0 %v22, 4
    %v24 = vpop.permute.xlu0 %23
    %vm25 = vcmask 64544
    %26 = vst.msk [vmem:[#allocation0] sm:$0x1] %vm25, %v24
    %s28 = ssub.s32 2, 1
    %v29 = vld [vmem:[#allocation0] sm:%s28]
    %s31 = ssub.s32 2, 1
    %32 = vst [vmem:[%s1] sm:%s31] %v29

// kernel: tile.33
$region0: #{tile.33}
  #allocation0 [shape = 's32[1]{0}', space=sflag, size = 0x4, scoped, tag = 'scoped memory for tile.33']
  %s0 = inlined_call_operand.vmem [shape: f32[16], index: 0, kind: input, shape index: {}]
  %s1 = inlined_call_operand.vmem [shape: f32[16,16], index: 1, kind: output, shape index: {}]
  // Predicated region
  $region2: #{tile.33} parent=0 // pred_check
    _
  $region3: #{tile.33} parent=0 // pred_check_branch
    %3 = sbr.rel (0) target = $region5
  $region4: #{tile.33} parent=0 // pred_region
    _
  $region5: #{tile.33} parent=0 // pred_fallthru
    _
  %v4 = vld [vmem:[%s0] ss:$0 sm:$0xff]
  %5 = vst [vmem:[%s1] sm:$0xff] %v4
  %s6 = scalar_lea.vmem %s1, 8
  %7 = vst [vmem:[%s6] sm:$0xff] %v4

// kernel: tile.34
$region0: #{tile.34}
  %s0 = inlined_call_operand.vmem [shape: f32[16,16], index: 0, kind: input, shape index: {}]
  %s1 = inlined_call_operand.vmem [shape: f32[1,256], index: 1, kind: output, shape index: {}]
  $region1: #{tile.34} parent=0
    #allocation0 [shape = 'u8[8192]{0}', space=vmem, size = 0x2000, scoped, tag = 'scoped mem for output reshape']
    %s2 = smov 3
    %v3 = vld [vmem:[%s0] ss:$8 sm:%s2]
    %vm4 = vcmask 130048
    %5 = vst.msk [vmem:[#allocation0] ss:$8 sm:$0x3] %vm4, %v3
    %s6 = scalar_lea.vmem %s0, 7
    %s7 = smov 3
    %v8 = vld [vmem:[%s6] ss:$8 sm:%s7]
    %9 = vrot.lane.b32.xlu0 %v8, 112
    %v10 = vpop.permute.xlu0 %9
    %vm11 = vcmask 1048448
    %12 = vst.msk [vmem:[#allocation0] ss:$8 sm:$0x3] %vm11, %v10
    %s13 = scalar_lea.vmem %s0, 6
    %s14 = smov 3
    %v15 = vld [vmem:[%s13] ss:$8 sm:%s14]
    %16 = vrot.lane.b32.xlu0 %v15, 96
    %v17 = vpop.permute.xlu0 %16
    %vm18 = vcmask 917248
    %19 = vst.msk [vmem:[#allocation0] ss:$8 sm:$0x3] %vm18, %v17
    %s20 = scalar_lea.vmem %s0, 5
    %s21 = smov 3
    %v22 = vld [vmem:[%s20] ss:$8 sm:%s21]
    %23 = vrot.lane.b32.xlu0 %v22, 80
    %v24 = vpop.permute.xlu0 %23
    %vm25 = vcmask 786048
    %26 = vst.msk [vmem:[#allocation0] ss:$8 sm:$0x3] %vm25, %v24
    %s27 = scalar_lea.vmem %s0, 4
    %s28 = smov 3
    %v29 = vld [vmem:[%s27] ss:$8 sm:%s28]
    %30 = vrot.lane.b32.xlu0 %v29, 64
    %v31 = vpop.permute.xlu0 %30
    %vm32 = vcmask 654848
    %33 = vst.msk [vmem:[#allocation0] ss:$8 sm:$0x3] %vm32, %v31
    %s34 = scalar_lea.vmem %s0, 3
    %s35 = smov 3
    %v36 = vld [vmem:[%s34] ss:$8 sm:%s35]
    %37 = vrot.lane.b32.xlu0 %v36, 48
    %v38 = vpop.permute.xlu0 %37
    %vm39 = vcmask 523648
    %40 = vst.msk [vmem:[#allocation0] ss:$8 sm:$0x3] %vm39, %v38
    %s41 = scalar_lea.vmem %s0, 2
    %s42 = smov 3
    %v43 = vld [vmem:[%s41] ss:$8 sm:%s42]
    %44 = vrot.lane.b32.xlu0 %v43, 32
    %v45 = vpop.permute.xlu0 %44
    %vm46 = vcmask 392448
    %47 = vst.msk [vmem:[#allocation0] ss:$8 sm:$0x3] %vm46, %v45
    %s48 = scalar_lea.vmem %s0, 1
    %s49 = smov 3
    %v50 = vld [vmem:[%s48] ss:$8 sm:%s49]
    %51 = vrot.lane.b32.xlu0 %v50, 16
    %v52 = vpop.permute.xlu0 %51
    %vm53 = vcmask 261248
    %54 = vst.msk [vmem:[#allocation0] ss:$8 sm:$0x3] %vm53, %v52
    %s56 = ssub.s32 2, 1
    %v57 = vld [vmem:[#allocation0] sm:%s56]
    %s59 = ssub.s32 2, 1
    %60 = vst [vmem:[%s1] sm:%s59] %v57
    %s61 = scalar_lea.vmem [#allocation0], 8
    %v62 = vld [vmem:[%s61] sm:%s56]
    %s64 = ssub.s32 2, 1
    %s65 = scalar_lea.vmem %s1, 1
    %66 = vst [vmem:[%s65] sm:%s64] %v62

// kernel: autoencoder_forward.6
$region0: #{autoencoder_forward.6}
  #allocation0 [shape = 'u32[]', space=smem, size = 0x4, offset = 0x4, fixed_abs, tag = 'smem constant byte address 0x4 - core index']
  #allocation1 [shape = 'u32[72,128]{1,0:T(1,128)}', space=vmem, size = 0x9000, scoped, tag = 'internal scratch']
  %s0 = inlined_call_operand.vmem [shape: bf16[8,16], index: 0, kind: input, shape index: {}]
  %s1 = inlined_call_operand.vmem [shape: bf16[16,256], index: 1, kind: input, shape index: {}]
  %s2 = inlined_call_operand.vmem [shape: f32[1,256], index: 2, kind: input, shape index: {}]
  %s3 = inlined_call_operand.vmem [shape: bf16[8,256], index: 3, kind: output, shape index: {}]
  %s4 = sld [smem:[#allocation0]]
  $region22: #{autoencoder_forward.6} parent=0
    _
  %s6 = ssub.s32 1, %s4
  %s7 = scalar_select 0, %s6, %s4
  // Predicated region
  $region2: #{autoencoder_forward.6} parent=0 // pred_check
    _
  $region3: #{autoencoder_forward.6} parent=0 // pred_check_branch
    %9 = sbr.rel (0) target = $region5
  $region4: #{autoencoder_forward.6} parent=0 // pred_region
    _
  $region5: #{autoencoder_forward.6} parent=0 // pred_fallthru
    _
  // Predicated region
  $region6: #{autoencoder_forward.6} parent=0 // pred_check
    _
  $region7: #{autoencoder_forward.6} parent=0 // pred_check_branch
    %11 = sbr.rel (0) target = $region9
  $region8: #{autoencoder_forward.6} parent=0 // pred_region
    _
  $region9: #{autoencoder_forward.6} parent=0 // pred_fallthru
    _
  // Predicated region
  $region10: #{autoencoder_forward.6} parent=0 // pred_check
    _
  $region11: #{autoencoder_forward.6} parent=0 // pred_check_branch
    %13 = sbr.rel (0) target = $region13
  $region12: #{autoencoder_forward.6} parent=0 // pred_region
    _
  $region13: #{autoencoder_forward.6} parent=0 // pred_fallthru
    _
  %v15 = vld [vmem:[%s0] sm:$0xf]
  %v16 = vld [vmem:[%s1] sm:$0xff]
  %v17 = vld [vmem:[%s1 + $0x8] sm:$0xff]
  %v18 = vld [vmem:[%s2] sm:$0x3]
  %v20 = vperm.slane %v18, 0
  %v21 = vperm.slane %v18, 1
  %v26 = vunpack.c.l.b16 %v16
  %v27 = vunpack.c.h.b16 %v16
  %v28 = vunpack.c.l.b16 %v17
  %v29 = vunpack.c.h.b16 %v17
  %v30 = vpack.c.b16 %v28, %v26
  %v31 = vpack.c.b16 %v29, %v27
  %vm34 = vcmask 130048
  %v36 = vsel %vm34, %v15, 0
  %38 = vmatpush.bf16.msra.mxu0 0
  %39 = vmatpush.bf16.msra.mxu0 0
  %40 = vmatpush.bf16.msra.mxu0 0
  %41 = vmatpush.bf16.msra.mxu0 0
  %42 = vmatpush.bf16.msra.mxu0 0
  %43 = vmatpush.bf16.msra.mxu0 0
  %44 = vmatpush.bf16.msra.mxu0 0
  %45 = vmatpush.bf16.msra.mxu0 %v30
  %46 = vmatmul.bf16.gmra.mxu0 %v36
  %v47 = vpop.f32.mrf.mxu0
  %v48 = vadd.f32 %v20, %v47
  %v49 = vpop.f32.mrf.mxu0
  %50 = vdwg.mxu0
  %51 = vmatpush.bf16.msra.mxu0 0
  %52 = vmatpush.bf16.msra.mxu0 0
  %53 = vmatpush.bf16.msra.mxu0 0
  %54 = vmatpush.bf16.msra.mxu0 0
  %55 = vmatpush.bf16.msra.mxu0 0
  %56 = vmatpush.bf16.msra.mxu0 0
  %57 = vmatpush.bf16.msra.mxu0 0
  %58 = vmatpush.bf16.msra.mxu0 %v31
  %59 = vmatmul.bf16.gmra.mxu0 %v36
  %v60 = vpop.f32.mrf.mxu0
  %v61 = vadd.f32 %v21, %v60
  %v62 = vpop.f32.mrf.mxu0
  %63 = vdwg.mxu0
  %v64 = vmax.f32 %v48, 0.0
  %v65 = vmax.f32 %v61, 0.0
  %v66 = vpack.c.bf16 %v65, %v64
  %67 = vst [vmem:[%s3] sm:$0xff] %v66
  // Predicated region
  $region14: #{autoencoder_forward.6} parent=0 // pred_check
    _
  $region15: #{autoencoder_forward.6} parent=0 // pred_check_branch
    %69 = sbr.rel (0) target = $region17
  $region16: #{autoencoder_forward.6} parent=0 // pred_region
    _
  $region17: #{autoencoder_forward.6} parent=0 // pred_fallthru
    _
  // Predicated region
  $region18: #{autoencoder_forward.6} parent=0 // pred_check
    _
  $region19: #{autoencoder_forward.6} parent=0 // pred_check_branch
    %71 = sbr.rel (0) target = $region21
  $region20: #{autoencoder_forward.6} parent=0 // pred_region
    _
  $region21: #{autoencoder_forward.6} parent=0 // pred_fallthru
    _

// kernel: autoencoder_forward.5
$region0: #{autoencoder_forward.5}
  #allocation0 [shape = 'u32[]', space=smem, size = 0x4, offset = 0x4, fixed_abs, tag = 'smem constant byte address 0x4 - core index']
  #allocation1 [shape = 'u32[72,128]{1,0:T(1,128)}', space=vmem, size = 0x9000, scoped, tag = 'internal scratch']
  %s0 = inlined_call_operand.vmem [shape: bf16[2,5,320], index: 0, kind: input, shape index: {}]
  %s1 = inlined_call_operand.vmem [shape: bf16[3,160,32], index: 1, kind: input, shape index: {}]
  %s2 = inlined_call_operand.vmem [shape: f32[1,16], index: 2, kind: input, shape index: {}]
  %s3 = inlined_call_operand.vmem [shape: bf16[2,4,16], index: 3, kind: output, shape index: {}]
  %s4 = sld [smem:[#allocation0]]
  $region45: #{autoencoder_forward.5} parent=0
    _
  %s6 = ssub.s32 1, %s4
  %s7 = scalar_select 0, %s6, %s4
  loop: start=0, step=1, limit=4
  $region2: #{autoencoder_forward.5} parent=0 // loop_pre_header
    _
  $region3: #{autoencoder_forward.5} parent=0 // loop_header
    %s9 = sphi 0, %s13
    %p10 = scmp.ge.s32.totalorder %s9, 4
    %s19 = sphi 0, %s21
    %s22 = sphi 0, %s19
    %s23 = sphi 0, %s22
    %s39 = sphi 0, %s23
    %s43 = sphi 0, %s43
    %s45 = sphi 0, %s43
    %s46 = sphi 0, %s45
    %s60 = sphi 0, %s46
    %s64 = sphi 0, %s64
    %s66 = sphi 0, %s64
    %s67 = sphi 0, %s66
    %s81 = sphi 0, %s67
    %s87 = sphi 0, %s89
    %s90 = sphi 0, %s87
    %s91 = sphi 0, %s90
    %s107 = sphi 0, %s91
  $region4: #{autoencoder_forward.5} parent=0 // loop_header_branch
    %12 = sbr.rel (%p10) target = $region8
  $region5: #{autoencoder_forward.5} parent=0 // loop_body
    %s14 = ssub.s32 %s9, 1
    %s15 = ssub.s32 %s9, 2
    %s16 = sadd.s32 %s9, 1
    %s17 = ssub.s32 %s9, %s16
    %p18 = scmp.eq.s32.totalorder %s17, 0
    %s20 = sadd.s32 %s19, 1
    %s21 = scalar_select %p18, %s19, %s20
    %p24 = pneg %p18
    %p25 = scmp.eq.s32.totalorder %s9, 1
    %p26 = por %p24, %p25
    %p27 = scmp.ne.s32.totalorder %s19, %s22
    %p28 = scmp.eq.s32.totalorder %s9, 0
    %p29 = por %p27, %p28
    %p30 = scmp.ne.s32.totalorder %s19, %s22
    %p31 = scmp.eq.s32.totalorder %s14, 1
    %p32 = por %p30, %p31
    %p33 = scmp.ne.s32.totalorder %s22, %s23
    %p34 = scmp.eq.s32.totalorder %s14, 0
    %p35 = por %p33, %p34
    %p36 = scmp.ne.s32.totalorder %s22, %s23
    %p37 = scmp.eq.s32.totalorder %s15, 1
    %p38 = por %p36, %p37
    %p40 = scmp.ne.s32.totalorder %s23, %s39
    %p41 = scmp.eq.s32.totalorder %s15, 0
    %p42 = por %p40, %p41
    %s44 = sadd.s32 %s43, 1
    %p47 = scmp.eq.s32.totalorder %s9, 1
    %p48 = scmp.ne.s32.totalorder %s43, %s45
    %p49 = scmp.eq.s32.totalorder %s9, 0
    %p50 = por %p48, %p49
    %p51 = scmp.ne.s32.totalorder %s43, %s45
    %p52 = scmp.eq.s32.totalorder %s14, 1
    %p53 = por %p51, %p52
    %p54 = scmp.ne.s32.totalorder %s45, %s46
    %p55 = scmp.eq.s32.totalorder %s14, 0
    %p56 = por %p54, %p55
    %p57 = scmp.ne.s32.totalorder %s45, %s46
    %p58 = scmp.eq.s32.totalorder %s15, 1
    %p59 = por %p57, %p58
    %p61 = scmp.ne.s32.totalorder %s46, %s60
    %p62 = scmp.eq.s32.totalorder %s15, 0
    %p63 = por %p61, %p62
    %s65 = sadd.s32 %s64, 1
    %p68 = scmp.eq.s32.totalorder %s9, 1
    %p69 = scmp.ne.s32.totalorder %s64, %s66
    %p70 = scmp.eq.s32.totalorder %s9, 0
    %p71 = por %p69, %p70
    %p72 = scmp.ne.s32.totalorder %s64, %s66
    %p73 = scmp.eq.s32.totalorder %s14, 1
    %p74 = por %p72, %p73
    %p75 = scmp.ne.s32.totalorder %s66, %s67
    %p76 = scmp.eq.s32.totalorder %s14, 0
    %p77 = por %p75, %p76
    %p78 = scmp.ne.s32.totalorder %s66, %s67
    %p79 = scmp.eq.s32.totalorder %s15, 1
    %p80 = por %p78, %p79
    %p82 = scmp.ne.s32.totalorder %s67, %s81
    %p83 = scmp.eq.s32.totalorder %s15, 0
    %p84 = por %p82, %p83
    %s85 = ssub.s32 %s9, %s16
    %p86 = scmp.eq.s32.totalorder %s85, 0
    %s88 = sadd.s32 %s87, 1
    %s89 = scalar_select %p86, %s87, %s88
    %p92 = pneg %p86
    %p93 = scmp.eq.s32.totalorder %s9, 1
    %p94 = por %p92, %p93
    %p95 = scmp.ne.s32.totalorder %s87, %s90
    %p96 = scmp.eq.s32.totalorder %s9, 0
    %p97 = por %p95, %p96
    %p98 = scmp.ne.s32.totalorder %s87, %s90
    %p99 = scmp.eq.s32.totalorder %s14, 1
    %p100 = por %p98, %p99
    %p101 = scmp.ne.s32.totalorder %s90, %s91
    %p102 = scmp.eq.s32.totalorder %s14, 0
    %p103 = por %p101, %p102
    %p104 = scmp.ne.s32.totalorder %s90, %s91
    %p105 = scmp.eq.s32.totalorder %s15, 1
    %p106 = por %p104, %p105
    %p108 = scmp.ne.s32.totalorder %s91, %s107
    %p109 = scmp.eq.s32.totalorder %s15, 0
    %p110 = por %p108, %p109
    %p111 = scmp.le.s32.totalorder 1, %s9
    %p112 = scmp.lt.s32.totalorder %s9, 3
    %p113 = pnand %p111, %p112
    %p114 = pneg %p113
    // Predicated region
    $region9: #{autoencoder_forward.5} parent=5 // pred_check
      _
    $region10: #{autoencoder_forward.5} parent=5 // pred_check_branch
      %116 = sbr.rel (%p113) target = $region12
    $region11: #{autoencoder_forward.5} parent=5 // pred_region
      %s117 = ssub.s32 %s9, 1
      // Predicated region
      $region13: #{autoencoder_forward.5} parent=11 // pred_check
        %p118 = pneg %p56
      $region14: #{autoencoder_forward.5} parent=11 // pred_check_branch
        %120 = sbr.rel (%p118) target = $region16
      $region15: #{autoencoder_forward.5} parent=11 // pred_region
        _
      $region16: #{autoencoder_forward.5} parent=11 // pred_fallthru
        _
      // Predicated region
      $region17: #{autoencoder_forward.5} parent=11 // pred_check
        %p121 = pneg %p77
      $region18: #{autoencoder_forward.5} parent=11 // pred_check_branch
        %123 = sbr.rel (%p121) target = $region20
      $region19: #{autoencoder_forward.5} parent=11 // pred_region
        _
      $region20: #{autoencoder_forward.5} parent=11 // pred_fallthru
        _
    $region12: #{autoencoder_forward.5} parent=5 // pred_fallthru
      _
    %p124 = scmp.lt.s32.totalorder %s9, 2
    // Predicated region
    $region21: #{autoencoder_forward.5} parent=5 // pred_check
      %p125 = pneg %p124
    $region22: #{autoencoder_forward.5} parent=5 // pred_check_branch
      %127 = sbr.rel (%p125) target = $region24
    $region23: #{autoencoder_forward.5} parent=5 // pred_region
      // Predicated region
      $region25: #{autoencoder_forward.5} parent=23 // pred_check
        %p128 = pneg %p29
      $region26: #{autoencoder_forward.5} parent=23 // pred_check_branch
        %130 = sbr.rel (%p128) target = $region28
      $region27: #{autoencoder_forward.5} parent=23 // pred_region
        %p131 = scmp.lt.s32.totalorder %s9, 1
        %s132 = scalar_select %p131, %s9, 1
        %s133 = smul.addr %s132, 3
        %s134 = smul.addr %s133, 4
        %s135 = scalar_lea.vmem %s0, %s134
      $region28: #{autoencoder_forward.5} parent=23 // pred_fallthru
        _
    $region24: #{autoencoder_forward.5} parent=5 // pred_fallthru
      _
    %p136 = scmp.le.s32.totalorder 1, %s9
    %p137 = scmp.lt.s32.totalorder %s9, 3
    %p138 = pnand %p136, %p137
    %p139 = pneg %p138
    // Predicated region
    $region29: #{autoencoder_forward.5} parent=5 // pred_check
      _
    $region30: #{autoencoder_forward.5} parent=5 // pred_check_branch
      %141 = sbr.rel (%p138) target = $region32
    $region31: #{autoencoder_forward.5} parent=5 // pred_region
      %s142 = ssub.s32 %s9, 1
      %p143 = scmp.lt.s32.totalorder %s14, 1
      %s144 = scalar_select %p143, %s14, 1
      %s145 = smul.addr %s144, 3
      %s146 = smul.addr %s145, 4
      %s147 = scalar_lea.vmem %s0, %s146
      %p148 = pneg %p35
      %p149 = pneg %p32
      %p150 = pneg %p56
      %p151 = pneg %p53
      %p152 = pneg %p77
      %p153 = pneg %p74
      %p154 = pneg %p103
      %p155 = pneg %p100
      %p156 = scmp.lt.s32.totalorder %s14, 1
      %s157 = scalar_select %p156, %s14, 1
      %s158 = smul.addr %s157, 2
      %s159 = scalar_lea.vmem %s3, %s158
      %p160 = scmp.lt.s32.totalorder %s14, 1
      %s161 = scalar_select %p160, %s14, 1
      %s162 = smul.addr %s161, 3
      %s163 = smul.addr %s162, 4
      %s164 = scalar_lea.vmem %s0, %s163
      %p165 = scmp.lt.s32.totalorder %s14, 1
      %s166 = scalar_select %p165, %s14, 1
      %s167 = smul.addr %s166, 2
      %s168 = scalar_lea.vmem %s3, %s167
      %v170 = vld [vmem:[%s164] sm:$0x33]
      %v171 = vld [vmem:[%s1] sm:$0xf]
      %v172 = vld [vmem:[%s1 + $0x4] sm:$0xf]
      %v173 = vld [vmem:[%s1 + $0x8] sm:$0xf]
      %v174 = vld [vmem:[%s1 + $0xc] sm:$0xf]
      %v175 = vld [vmem:[%s1 + $0x10] sm:$0xf]
      %v176 = vld [vmem:[%s1 + $0x14] sm:$0xf]
      %v177 = vld [vmem:[%s1 + $0x18] sm:$0xf]
      %v178 = vld [vmem:[%s1 + $0x1c] sm:$0xf]
      %v179 = vld [vmem:[%s1 + $0x20] sm:$0xf]
      %v180 = vld [vmem:[%s1 + $0x24] sm:$0xf]
      %v181 = vld [vmem:[%s1 + $0x28] sm:$0xf]
      %v182 = vld [vmem:[%s1 + $0x2c] sm:$0xf]
      %v183 = vld [vmem:[%s1 + $0x30] sm:$0xf]
      %v184 = vld [vmem:[%s1 + $0x34] sm:$0xf]
      %v185 = vld [vmem:[%s1 + $0x38] sm:$0xf]
      %v186 = vld [vmem:[%s1 + $0x3c] sm:$0xf]
      %v187 = vld [vmem:[%s1 + $0x40] sm:$0xf]
      %v188 = vld [vmem:[%s1 + $0x44] sm:$0xf]
      %v189 = vld [vmem:[%s1 + $0x48] sm:$0xf]
      %v190 = vld [vmem:[%s1 + $0x4c] sm:$0xf]
      %v191 = vld [vmem:[%s164 + $0x4] sm:$0x33]
      %s192 = scalar_lea.vmem %s1, 80
      %v193 = vld [vmem:[%s192] sm:$0xf]
      %v194 = vld [vmem:[%s192 + $0x4] sm:$0xf]
      %v195 = vld [vmem:[%s192 + $0x8] sm:$0xf]
      %v196 = vld [vmem:[%s192 + $0xc] sm:$0xf]
      %v197 = vld [vmem:[%s192 + $0x10] sm:$0xf]
      %v198 = vld [vmem:[%s192 + $0x14] sm:$0xf]
      %v199 = vld [vmem:[%s192 + $0x18] sm:$0xf]
      %v200 = vld [vmem:[%s192 + $0x1c] sm:$0xf]
      %v201 = vld [vmem:[%s192 + $0x20] sm:$0xf]
      %v202 = vld [vmem:[%s192 + $0x24] sm:$0xf]
      %v203 = vld [vmem:[%s192 + $0x28] sm:$0xf]
      %v204 = vld [vmem:[%s192 + $0x2c] sm:$0xf]
      %v205 = vld [vmem:[%s192 + $0x30] sm:$0xf]
      %v206 = vld [vmem:[%s192 + $0x34] sm:$0xf]
      %v207 = vld [vmem:[%s192 + $0x38] sm:$0xf]
      %v208 = vld [vmem:[%s192 + $0x3c] sm:$0xf]
      %v209 = vld [vmem:[%s192 + $0x40] sm:$0xf]
      %v210 = vld [vmem:[%s192 + $0x44] sm:$0xf]
      %v211 = vld [vmem:[%s192 + $0x48] sm:$0xf]
      %v212 = vld [vmem:[%s192 + $0x4c] sm:$0xf]
      %v214 = vunpack.c.l.b16 %v191
      %v215 = vunpack.c.h.b16 %v191
      %v216 = vpack.c.b16 %v214, %v214
      %v217 = vpack.c.b16 %v215, %v215
      %218 = vrot.lane.b32.xlu0 %v216, 96
      %v219 = vpop.permute.xlu0 %218
      %220 = vrot.lane.b32.xlu0 %v217, 96
      %v221 = vpop.permute.xlu0 %220
      %vm222 = vcmask 785408
      %v223 = vsel %vm222, %v219, %v221
      %v245 = vunpack.c.l.b16 %v193
      %v246 = vunpack.c.l.b16 %v194
      %v247 = vunpack.c.l.b16 %v195
      %v248 = vunpack.c.l.b16 %v196
      %v249 = vunpack.c.l.b16 %v197
      %v250 = vunpack.c.l.b16 %v198
      %v251 = vunpack.c.l.b16 %v199
      %v252 = vunpack.c.l.b16 %v200
      %v253 = vunpack.c.l.b16 %v201
      %v254 = vunpack.c.l.b16 %v202
      %v255 = vunpack.c.l.b16 %v203
      %v256 = vunpack.c.l.b16 %v204
      %v257 = vunpack.c.l.b16 %v205
      %v258 = vunpack.c.l.b16 %v206
      %v259 = vunpack.c.l.b16 %v207
      %v260 = vunpack.c.l.b16 %v208
      %v261 = vunpack.c.l.b16 %v209
      %v262 = vunpack.c.l.b16 %v210
      %v263 = vunpack.c.l.b16 %v211
      %v264 = vunpack.c.l.b16 %v212
      %v265 = vpack.c.b16 %v246, %v245
      %v266 = vpack.c.b16 %v248, %v247
      %v267 = vpack.c.b16 %v250, %v249
      %v268 = vpack.c.b16 %v252, %v251
      %v269 = vpack.c.b16 %v254, %v253
      %v270 = vpack.c.b16 %v256, %v255
      %v271 = vpack.c.b16 %v258, %v257
      %v272 = vpack.c.b16 %v260, %v259
      %v273 = vpack.c.b16 %v262, %v261
      %v274 = vpack.c.b16 %v264, %v263
      %vm285 = vcmask 261120
      %v287 = vsel %vm285, %v221, 0
      %289 = vmatpush.bf16.msra.mxu0 %v272
      %290 = vmatpush.bf16.msra.mxu0 %v271
      %291 = vmatpush.bf16.msra.mxu0 %v270
      %292 = vmatpush.bf16.msra.mxu0 %v269
      %293 = vmatpush.bf16.msra.mxu0 %v268
      %294 = vmatpush.bf16.msra.mxu0 %v267
      %295 = vmatpush.bf16.msra.mxu0 %v266
      %296 = vmatpush.bf16.msra.mxu0 %v265
      %297 = vmatmul.bf16.gmra.mxu0 %v223
      %v298 = vpop.f32.mrf.mxu0
      %v299 = vadd.f32 0.0, %v298
      %v300 = vpop.f32.mrf.mxu0
      %301 = vdwg.mxu0
      %302 = vmatpush.bf16.msra.mxu0 0
      %303 = vmatpush.bf16.msra.mxu0 0
      %304 = vmatpush.bf16.msra.mxu0 0
      %305 = vmatpush.bf16.msra.mxu0 0
      %306 = vmatpush.bf16.msra.mxu0 0
      %307 = vmatpush.bf16.msra.mxu0 0
      %308 = vmatpush.bf16.msra.mxu0 %v274
      %309 = vmatpush.bf16.msra.mxu0 %v273
      %310 = vmatmul.bf16.gmra.mxu0 %v287
      %v311 = vpop.f32.mrf.mxu0
      %v312 = vadd.f32 %v299, %v311
      %v313 = vpop.f32.mrf.mxu0
      %314 = vdwg.mxu0
      %v316 = vunpack.c.l.b16 %v170
      %v317 = vunpack.c.h.b16 %v170
      %v318 = vpack.c.b16 %v316, %v316
      %v319 = vpack.c.b16 %v317, %v317
      %v341 = vunpack.c.l.b16 %v171
      %v342 = vunpack.c.l.b16 %v172
      %v343 = vunpack.c.l.b16 %v173
      %v344 = vunpack.c.l.b16 %v174
      %v345 = vunpack.c.l.b16 %v175
      %v346 = vunpack.c.l.b16 %v176
      %v347 = vunpack.c.l.b16 %v177
      %v348 = vunpack.c.l.b16 %v178
      %v349 = vunpack.c.l.b16 %v179
      %v350 = vunpack.c.l.b16 %v180
      %v351 = vunpack.c.l.b16 %v181
      %v352 = vunpack.c.l.b16 %v182
      %v353 = vunpack.c.l.b16 %v183
      %v354 = vunpack.c.l.b16 %v184
      %v355 = vunpack.c.l.b16 %v185
      %v356 = vunpack.c.l.b16 %v186
      %v357 = vunpack.c.l.b16 %v187
      %v358 = vunpack.c.l.b16 %v188
      %v359 = vunpack.c.l.b16 %v189
      %v360 = vunpack.c.l.b16 %v190
      %v361 = vpack.c.b16 %v342, %v341
      %v362 = vpack.c.b16 %v344, %v343
      %v363 = vpack.c.b16 %v346, %v345
      %v364 = vpack.c.b16 %v348, %v347
      %v365 = vpack.c.b16 %v350, %v349
      %v366 = vpack.c.b16 %v352, %v351
      %v367 = vpack.c.b16 %v354, %v353
      %v368 = vpack.c.b16 %v356, %v355
      %v369 = vpack.c.b16 %v358, %v357
      %v370 = vpack.c.b16 %v360, %v359
      %v382 = vsel %vm285, %v319, 0
      %384 = vmatpush.bf16.msra.mxu0 %v368
      %385 = vmatpush.bf16.msra.mxu0 %v367
      %386 = vmatpush.bf16.msra.mxu0 %v366
      %387 = vmatpush.bf16.msra.mxu0 %v365
      %388 = vmatpush.bf16.msra.mxu0 %v364
      %389 = vmatpush.bf16.msra.mxu0 %v363
      %390 = vmatpush.bf16.msra.mxu0 %v362
      %391 = vmatpush.bf16.msra.mxu0 %v361
      %392 = vmatmul.bf16.gmra.mxu0 %v318
      %v393 = vpop.f32.mrf.mxu0
      %v394 = vadd.f32 %v312, %v393
      %v395 = vpop.f32.mrf.mxu0
      %396 = vdwg.mxu0
      %397 = vmatpush.bf16.msra.mxu0 0
      %398 = vmatpush.bf16.msra.mxu0 0
      %399 = vmatpush.bf16.msra.mxu0 0
      %400 = vmatpush.bf16.msra.mxu0 0
      %401 = vmatpush.bf16.msra.mxu0 0
      %402 = vmatpush.bf16.msra.mxu0 0
      %403 = vmatpush.bf16.msra.mxu0 %v370
      %404 = vmatpush.bf16.msra.mxu0 %v369
      %405 = vmatmul.bf16.gmra.mxu0 %v382
      %v406 = vpop.f32.mrf.mxu0
      %v407 = vadd.f32 %v394, %v406
      %v408 = vpop.f32.mrf.mxu0
      %409 = vdwg.mxu0
      %v410 = vld [vmem:[%s164] sm:$0x77]
      %s411 = scalar_lea.vmem %s1, 160
      %v412 = vld [vmem:[%s411] sm:$0xf]
      %v413 = vld [vmem:[%s411 + $0x4] sm:$0xf]
      %v414 = vld [vmem:[%s411 + $0x8] sm:$0xf]
      %v415 = vld [vmem:[%s411 + $0xc] sm:$0xf]
      %v416 = vld [vmem:[%s411 + $0x10] sm:$0xf]
      %v417 = vld [vmem:[%s411 + $0x14] sm:$0xf]
      %v418 = vld [vmem:[%s411 + $0x18] sm:$0xf]
      %v419 = vld [vmem:[%s411 + $0x1c] sm:$0xf]
      %v420 = vld [vmem:[%s411 + $0x20] sm:$0xf]
      %v421 = vld [vmem:[%s411 + $0x24] sm:$0xf]
      %v422 = vld [vmem:[%s411 + $0x28] sm:$0xf]
      %v423 = vld [vmem:[%s411 + $0x2c] sm:$0xf]
      %v424 = vld [vmem:[%s411 + $0x30] sm:$0xf]
      %v425 = vld [vmem:[%s411 + $0x34] sm:$0xf]
      %v426 = vld [vmem:[%s411 + $0x38] sm:$0xf]
      %v427 = vld [vmem:[%s411 + $0x3c] sm:$0xf]
      %v428 = vld [vmem:[%s411 + $0x40] sm:$0xf]
      %v429 = vld [vmem:[%s411 + $0x44] sm:$0xf]
      %v430 = vld [vmem:[%s411 + $0x48] sm:$0xf]
      %v431 = vld [vmem:[%s411 + $0x4c] sm:$0xf]
      %v433 = vunpack.c.l.b16 %v410
      %v434 = vunpack.c.h.b16 %v410
      %v435 = vpack.c.b16 %v433, %v433
      %v436 = vpack.c.b16 %v434, %v434
      %v438 = vshrl.u32 %v435, 16
      %v440 = vshll.u32 %v435, 16
      %v442 = vrot.slane %v440, 1
      %v443 = vor.u32 %v438, %v442
      %v445 = vshrl.u32 %v436, 16
      %v447 = vshll.u32 %v436, 16
      %v449 = vrot.slane %v447, 1
      %v450 = vor.u32 %v445, %v449
      %v472 = vunpack.c.l.b16 %v412
      %v473 = vunpack.c.l.b16 %v413
      %v474 = vunpack.c.l.b16 %v414
      %v475 = vunpack.c.l.b16 %v415
      %v476 = vunpack.c.l.b16 %v416
      %v477 = vunpack.c.l.b16 %v417
      %v478 = vunpack.c.l.b16 %v418
      %v479 = vunpack.c.l.b16 %v419
      %v480 = vunpack.c.l.b16 %v420
      %v481 = vunpack.c.l.b16 %v421
      %v482 = vunpack.c.l.b16 %v422
      %v483 = vunpack.c.l.b16 %v423
      %v484 = vunpack.c.l.b16 %v424
      %v485 = vunpack.c.l.b16 %v425
      %v486 = vunpack.c.l.b16 %v426
      %v487 = vunpack.c.l.b16 %v427
      %v488 = vunpack.c.l.b16 %v428
      %v489 = vunpack.c.l.b16 %v429
      %v490 = vunpack.c.l.b16 %v430
      %v491 = vunpack.c.l.b16 %v431
      %v492 = vpack.c.b16 %v473, %v472
      %v493 = vpack.c.b16 %v475, %v474
      %v494 = vpack.c.b16 %v477, %v476
      %v495 = vpack.c.b16 %v479, %v478
      %v496 = vpack.c.b16 %v481, %v480
      %v497 = vpack.c.b16 %v483, %v482
      %v498 = vpack.c.b16 %v485, %v484
      %v499 = vpack.c.b16 %v487, %v486
      %v500 = vpack.c.b16 %v489, %v488
      %v501 = vpack.c.b16 %v491, %v490
      %v513 = vsel %vm285, %v450, 0
      %515 = vmatpush.bf16.msra.mxu0 %v499
      %516 = vmatpush.bf16.msra.mxu0 %v498
      %517 = vmatpush.bf16.msra.mxu0 %v497
      %518 = vmatpush.bf16.msra.mxu0 %v496
      %519 = vmatpush.bf16.msra.mxu0 %v495
      %520 = vmatpush.bf16.msra.mxu0 %v494
      %521 = vmatpush.bf16.msra.mxu0 %v493
      %522 = vmatpush.bf16.msra.mxu0 %v492
      %523 = vmatmul.bf16.gmra.mxu0 %v443
      %v524 = vpop.f32.mrf.mxu0
      %v525 = vadd.f32 0.0, %v524
      %v526 = vpop.f32.mrf.mxu0
      %527 = vdwg.mxu0
      %528 = vmatpush.bf16.msra.mxu0 0
      %529 = vmatpush.bf16.msra.mxu0 0
      %530 = vmatpush.bf16.msra.mxu0 0
      %531 = vmatpush.bf16.msra.mxu0 0
      %532 = vmatpush.bf16.msra.mxu0 0
      %533 = vmatpush.bf16.msra.mxu0 0
      %534 = vmatpush.bf16.msra.mxu0 %v501
      %535 = vmatpush.bf16.msra.mxu0 %v500
      %536 = vmatmul.bf16.gmra.mxu0 %v513
      %v537 = vpop.f32.mrf.mxu0
      %v538 = vadd.f32 %v525, %v537
      %v539 = vpop.f32.mrf.mxu0
      %540 = vdwg.mxu0
      %v541 = vadd.f32 %v407, %v538
      %543 = vrot.lane.b32.xlu0 %v541, 112
      %v544 = vpop.permute.xlu0 %543
      %v546 = vmax.f32 %v541, %v544
      %547 = vmatpush.bf16.msra.mxu0 %v272
      %548 = vmatpush.bf16.msra.mxu0 %v271
      %549 = vmatpush.bf16.msra.mxu0 %v270
      %550 = vmatpush.bf16.msra.mxu0 %v269
      %551 = vmatpush.bf16.msra.mxu0 %v268
      %552 = vmatpush.bf16.msra.mxu0 %v267
      %553 = vmatpush.bf16.msra.mxu0 %v266
      %554 = vmatpush.bf16.msra.mxu0 %v265
      %555 = vmatmul.bf16.gmra.mxu0 %v443
      %v556 = vpop.f32.mrf.mxu0
      %v557 = vadd.f32 0.0, %v556
      %v558 = vpop.f32.mrf.mxu0
      %559 = vdwg.mxu0
      %560 = vmatpush.bf16.msra.mxu0 0
      %561 = vmatpush.bf16.msra.mxu0 0
      %562 = vmatpush.bf16.msra.mxu0 0
      %563 = vmatpush.bf16.msra.mxu0 0
      %564 = vmatpush.bf16.msra.mxu0 0
      %565 = vmatpush.bf16.msra.mxu0 0
      %566 = vmatpush.bf16.msra.mxu0 %v274
      %567 = vmatpush.bf16.msra.mxu0 %v273
      %568 = vmatmul.bf16.gmra.mxu0 %v513
      %v569 = vpop.f32.mrf.mxu0
      %v570 = vadd.f32 %v557, %v569
      %v571 = vpop.f32.mrf.mxu0
      %572 = vdwg.mxu0
      %573 = vmatpush.bf16.msra.mxu0 %v368
      %574 = vmatpush.bf16.msra.mxu0 %v367
      %575 = vmatpush.bf16.msra.mxu0 %v366
      %576 = vmatpush.bf16.msra.mxu0 %v365
      %577 = vmatpush.bf16.msra.mxu0 %v364
      %578 = vmatpush.bf16.msra.mxu0 %v363
      %579 = vmatpush.bf16.msra.mxu0 %v362
      %580 = vmatpush.bf16.msra.mxu0 %v361
      %581 = vmatmul.bf16.gmra.mxu0 %v223
      %v582 = vpop.f32.mrf.mxu0
      %v583 = vadd.f32 %v570, %v582
      %v584 = vpop.f32.mrf.mxu0
      %585 = vdwg.mxu0
      %586 = vmatpush.bf16.msra.mxu0 0
      %587 = vmatpush.bf16.msra.mxu0 0
      %588 = vmatpush.bf16.msra.mxu0 0
      %589 = vmatpush.bf16.msra.mxu0 0
      %590 = vmatpush.bf16.msra.mxu0 0
      %591 = vmatpush.bf16.msra.mxu0 0
      %592 = vmatpush.bf16.msra.mxu0 %v370
      %593 = vmatpush.bf16.msra.mxu0 %v369
      %594 = vmatmul.bf16.gmra.mxu0 %v287
      %v595 = vpop.f32.mrf.mxu0
      %v596 = vadd.f32 %v583, %v595
      %v597 = vpop.f32.mrf.mxu0
      %598 = vdwg.mxu0
      %v599 = vld [vmem:[%s164 + $0x4] sm:$0x77]
      %v601 = vunpack.c.l.b16 %v599
      %v602 = vunpack.c.h.b16 %v599
      %v603 = vpack.c.b16 %v601, %v601
      %v604 = vpack.c.b16 %v602, %v602
      %v606 = vshrl.u32 %v603, 16
      %v608 = vshll.u32 %v603, 16
      %v610 = vrot.slane %v608, 1
      %v611 = vor.u32 %v606, %v610
      %v613 = vshrl.u32 %v604, 16
      %v615 = vshll.u32 %v604, 16
      %v617 = vrot.slane %v615, 1
      %v618 = vor.u32 %v613, %v617
      %619 = vrot.lane.b32.xlu0 %v611, 96
      %v620 = vpop.permute.xlu0 %619
      %621 = vrot.lane.b32.xlu0 %v618, 96
      %v622 = vpop.permute.xlu0 %621
      %v623 = vsel %vm222, %v620, %v622
      %v626 = vsel %vm285, %v622, 0
      %628 = vmatpush.bf16.msra.mxu0 %v499
      %629 = vmatpush.bf16.msra.mxu0 %v498
      %630 = vmatpush.bf16.msra.mxu0 %v497
      %631 = vmatpush.bf16.msra.mxu0 %v496
      %632 = vmatpush.bf16.msra.mxu0 %v495
      %633 = vmatpush.bf16.msra.mxu0 %v494
      %634 = vmatpush.bf16.msra.mxu0 %v493
      %635 = vmatpush.bf16.msra.mxu0 %v492
      %636 = vmatmul.bf16.gmra.mxu0 %v623
      %v637 = vpop.f32.mrf.mxu0
      %v638 = vadd.f32 0.0, %v637
      %v639 = vpop.f32.mrf.mxu0
      %640 = vdwg.mxu0
      %641 = vmatpush.bf16.msra.mxu0 0
      %642 = vmatpush.bf16.msra.mxu0 0
      %643 = vmatpush.bf16.msra.mxu0 0
      %644 = vmatpush.bf16.msra.mxu0 0
      %645 = vmatpush.bf16.msra.mxu0 0
      %646 = vmatpush.bf16.msra.mxu0 0
      %647 = vmatpush.bf16.msra.mxu0 %v501
      %648 = vmatpush.bf16.msra.mxu0 %v500
      %649 = vmatmul.bf16.gmra.mxu0 %v626
      %v650 = vpop.f32.mrf.mxu0
      %v651 = vadd.f32 %v638, %v650
      %v652 = vpop.f32.mrf.mxu0
      %653 = vdwg.mxu0
      %v654 = vadd.f32 %v596, %v651
      %656 = vrot.lane.b32.xlu0 %v654, 112
      %v657 = vpop.permute.xlu0 %656
      %v659 = vmax.f32 %v654, %v657
      %v660 = vmax.f32 %v546, %v659
      %v661 = vld [vmem:[%s2] sm:$0x1]
      %v663 = vperm.slane %v661, 0
      %v665 = vadd.f32 %v660, %v663
      %v666 = vmax.f32 %v665, 0.0
      %v667 = vpack.c.bf16 %v666, %v666
      %vm668 = vcmask 123904
      %669 = vst.msk [vmem:[%s168] sm:$0x3] %vm668, %v667
      %p670 = scmp.lt.s32.totalorder %s14, 1
      %s671 = scalar_select %p670, %s14, 1
      %s672 = smul.addr %s671, 2
      %s673 = scalar_lea.vmem %s3, %s672
      // Predicated region
      $region33: #{autoencoder_forward.5} parent=31 // pred_check
        %p674 = pneg %p100
      $region34: #{autoencoder_forward.5} parent=31 // pred_check_branch
        %676 = sbr.rel (%p674) target = $region36
      $region35: #{autoencoder_forward.5} parent=31 // pred_region
        _
      $region36: #{autoencoder_forward.5} parent=31 // pred_fallthru
        _
    $region32: #{autoencoder_forward.5} parent=5 // pred_fallthru
      _
    %p677 = scmp.le.s32.totalorder 2, %s9
    // Predicated region
    $region37: #{autoencoder_forward.5} parent=5 // pred_check
      %p678 = pneg %p677
    $region38: #{autoencoder_forward.5} parent=5 // pred_check_branch
      %680 = sbr.rel (%p678) target = $region40
    $region39: #{autoencoder_forward.5} parent=5 // pred_region
      %s681 = ssub.s32 %s9, 2
      // Predicated region
      $region41: #{autoencoder_forward.5} parent=39 // pred_check
        %p682 = pneg %p106
      $region42: #{autoencoder_forward.5} parent=39 // pred_check_branch
        %684 = sbr.rel (%p682) target = $region44
      $region43: #{autoencoder_forward.5} parent=39 // pred_region
        %p685 = scmp.lt.s32.totalorder %s15, 1
        %s686 = scalar_select %p685, %s15, 1
        %s687 = smul.addr %s686, 2
        %s688 = scalar_lea.vmem %s3, %s687
      $region44: #{autoencoder_forward.5} parent=39 // pred_fallthru
        _
    $region40: #{autoencoder_forward.5} parent=5 // pred_fallthru
      _
  $region6: #{autoencoder_forward.5} parent=0 // loop_footer
    %s13 = sadd.s32 1, %s9
  $region7: #{autoencoder_forward.5} parent=0 // loop_footer_branch
    %8 = sbr.rel target = $region3
  $region8: #{autoencoder_forward.5} parent=0 // loop_exit
    _

// kernel: tile.38
$region0: #{tile.38}
  #allocation0 [shape = 's32[1]{0}', space=sflag, size = 0x4, scoped, tag = 'scoped memory for tile.38']
  %s0 = inlined_call_operand.vmem [shape: f32[3], index: 0, kind: input, shape index: {}]
  %s1 = inlined_call_operand.vmem [shape: f32[32,3], index: 1, kind: output, shape index: {}]
  // Predicated region
  $region2: #{tile.38} parent=0 // pred_check
    _
  $region3: #{tile.38} parent=0 // pred_check_branch
    %3 = sbr.rel (0) target = $region5
  $region4: #{tile.38} parent=0 // pred_region
    _
  $region5: #{tile.38} parent=0 // pred_fallthru
    _
  %v4 = vld [vmem:[%s0] ss:$0 sm:$0xff]
  %5 = vst [vmem:[%s1] sm:$0xff] %v4
  %s6 = scalar_lea.vmem %s1, 8
  %7 = vst [vmem:[%s6] sm:$0xff] %v4
  %s8 = scalar_lea.vmem %s1, 16
  %9 = vst [vmem:[%s8] sm:$0xff] %v4
  %s10 = scalar_lea.vmem %s1, 24
  %11 = vst [vmem:[%s10] sm:$0xff] %v4

// kernel: tile.39
$region0: #{tile.39}
  %s0 = inlined_call_operand.vmem [shape: f32[32,3], index: 0, kind: input, shape index: {}]
  %s1 = inlined_call_operand.vmem [shape: f32[1,96], index: 1, kind: output, shape index: {}]
  $region1: #{tile.39} parent=0
    #allocation0 [shape = 'u8[4096]{0}', space=vmem, size = 0x1000, scoped, tag = 'scoped mem for output reshape']
    %v2 = vld [vmem:[%s0] sm:$0x1]
    %vm3 = vcmask 23552
    %4 = vst.msk [vmem:[#allocation0] sm:$0x1] %vm3, %v2
    %s5 = scalar_lea.vmem %s0, 31
    %v6 = vld [vmem:[%s5] sm:$0x1]
    %7 = vrot.lane.b32.xlu0 %v6, 93
    %v8 = vpop.permute.xlu0 %7
    %vm9 = vcmask 786152
    %10 = vst.msk [vmem:[#allocation0] sm:$0x1] %vm9, %v8
    %s11 = scalar_lea.vmem %s0, 30
    %v12 = vld [vmem:[%s11] sm:$0x1]
    %13 = vrot.lane.b32.xlu0 %v12, 90
    %v14 = vpop.permute.xlu0 %13
    %vm15 = vcmask 761552
    %16 = vst.msk [vmem:[#allocation0] sm:$0x1] %vm15, %v14
    %s17 = scalar_lea.vmem %s0, 29
    %v18 = vld [vmem:[%s17] sm:$0x1]
    %19 = vrot.lane.b32.xlu0 %v18, 87
    %v20 = vpop.permute.xlu0 %19
    %vm21 = vcmask 736952
    %22 = vst.msk [vmem:[#allocation0] sm:$0x1] %vm21, %v20
    %s23 = scalar_lea.vmem %s0, 28
    %v24 = vld [vmem:[%s23] sm:$0x1]
    %25 = vrot.lane.b32.xlu0 %v24, 84
    %v26 = vpop.permute.xlu0 %25
    %vm27 = vcmask 712352
    %28 = vst.msk [vmem:[#allocation0] sm:$0x1] %vm27, %v26
    %s29 = scalar_lea.vmem %s0, 27
    %v30 = vld [vmem:[%s29] sm:$0x1]
    %31 = vrot.lane.b32.xlu0 %v30, 81
    %v32 = vpop.permute.xlu0 %31
    %vm33 = vcmask 687752
    %34 = vst.msk [vmem:[#allocation0] sm:$0x1] %vm33, %v32
    %s35 = scalar_lea.vmem %s0, 26
    %v36 = vld [vmem:[%s35] sm:$0x1]
    %37 = vrot.lane.b32.xlu0 %v36, 78
    %v38 = vpop.permute.xlu0 %37
    %vm39 = vcmask 663152
    %40 = vst.msk [vmem:[#allocation0] sm:$0x1] %vm39, %v38
    %s41 = scalar_lea.vmem %s0, 25
    %v42 = vld [vmem:[%s41] sm:$0x1]
    %43 = vrot.lane.b32.xlu0 %v42, 75
    %v44 = vpop.permute.xlu0 %43
    %vm45 = vcmask 638552
    %46 = vst.msk [vmem:[#allocation0] sm:$0x1] %vm45, %v44
    %s47 = scalar_lea.vmem %s0, 24
    %v48 = vld [vmem:[%s47] sm:$0x1]
    %49 = vrot.lane.b32.xlu0 %v48, 72
    %v50 = vpop.permute.xlu0 %49
    %vm51 = vcmask 613952
    %52 = vst.msk [vmem:[#allocation0] sm:$0x1] %vm51, %v50
    %s53 = scalar_lea.vmem %s0, 23
    %v54 = vld [vmem:[%s53] sm:$0x1]
    %55 = vrot.lane.b32.xlu0 %v54, 69
    %v56 = vpop.permute.xlu0 %55
    %vm57 = vcmask 589352
    %58 = vst.msk [vmem:[#allocation0] sm:$0x1] %vm57, %v56
    %s59 = scalar_lea.vmem %s0, 22
    %v60 = vld [vmem:[%s59] sm:$0x1]
    %61 = vrot.lane.b32.xlu0 %v60, 66
    %v62 = vpop.permute.xlu0 %61
    %vm63 = vcmask 564752
    %64 = vst.msk [vmem:[#allocation0] sm:$0x1] %vm63, %v62
    %s65 = scalar_lea.vmem %s0, 21
    %v66 = vld [vmem:[%s65] sm:$0x1]
    %67 = vrot.lane.b32.xlu0 %v66, 63
    %v68 = vpop.permute.xlu0 %67
    %vm69 = vcmask 540152
    %70 = vst.msk [vmem:[#allocation0] sm:$0x1] %vm69, %v68
    %s71 = scalar_lea.vmem %s0, 20
    %v72 = vld [vmem:[%s71] sm:$0x1]
    %73 = vrot.lane.b32.xlu0 %v72, 60
    %v74 = vpop.permute.xlu0 %73
    %vm75 = vcmask 515552
    %76 = vst.msk [vmem:[#allocation0] sm:$0x1] %vm75, %v74
    %s77 = scalar_lea.vmem %s0, 19
    %v78 = vld [vmem:[%s77] sm:$0x1]
    %79 = vrot.lane.b32.xlu0 %v78, 57
    %v80 = vpop.permute.xlu0 %79
    %vm81 = vcmask 490952
    %82 = vst.msk [vmem:[#allocation0] sm:$0x1] %vm81, %v80
    %s83 = scalar_lea.vmem %s0, 18
    %v84 = vld [vmem:[%s83] sm:$0x1]
    %85 = vrot.lane.b32.xlu0 %v84, 54
    %v86 = vpop.permute.xlu0 %85
    %vm87 = vcmask 466352
    %88 = vst.msk [vmem:[#allocation0] sm:$0x1] %vm87, %v86
    %s89 = scalar_lea.vmem %s0, 17
    %v90 = vld [vmem:[%s89] sm:$0x1]
    %91 = vrot.lane.b32.xlu0 %v90, 51
    %v92 = vpop.permute.xlu0 %91
    %vm93 = vcmask 441752
    %94 = vst.msk [vmem:[#allocation0] sm:$0x1] %vm93, %v92
    %s95 = scalar_lea.vmem %s0, 16
    %v96 = vld [vmem:[%s95] sm:$0x1]
    %97 = vrot.lane.b32.xlu0 %v96, 48
    %v98 = vpop.permute.xlu0 %97
    %vm99 = vcmask 417152
    %100 = vst.msk [vmem:[#allocation0] sm:$0x1] %vm99, %v98
    %s101 = scalar_lea.vmem %s0, 15
    %v102 = vld [vmem:[%s101] sm:$0x1]
    %103 = vrot.lane.b32.xlu0 %v102, 45
    %v104 = vpop.permute.xlu0 %103
    %vm105 = vcmask 392552
    %106 = vst.msk [vmem:[#allocation0] sm:$0x1] %vm105, %v104
    %s107 = scalar_lea.vmem %s0, 14
    %v108 = vld [vmem:[%s107] sm:$0x1]
    %109 = vrot.lane.b32.xlu0 %v108, 42
    %v110 = vpop.permute.xlu0 %109
    %vm111 = vcmask 367952
    %112 = vst.msk [vmem:[#allocation0] sm:$0x1] %vm111, %v110
    %s113 = scalar_lea.vmem %s0, 13
    %v114 = vld [vmem:[%s113] sm:$0x1]
    %115 = vrot.lane.b32.xlu0 %v114, 39
    %v116 = vpop.permute.xlu0 %115
    %vm117 = vcmask 343352
    %118 = vst.msk [vmem:[#allocation0] sm:$0x1] %vm117, %v116
    %s119 = scalar_lea.vmem %s0, 12
    %v120 = vld [vmem:[%s119] sm:$0x1]
    %121 = vrot.lane.b32.xlu0 %v120, 36
    %v122 = vpop.permute.xlu0 %121
    %vm123 = vcmask 318752
    %124 = vst.msk [vmem:[#allocation0] sm:$0x1] %vm123, %v122
    %s125 = scalar_lea.vmem %s0, 11
    %v126 = vld [vmem:[%s125] sm:$0x1]
    %127 = vrot.lane.b32.xlu0 %v126, 33
    %v128 = vpop.permute.xlu0 %127
    %vm129 = vcmask 294152
    %130 = vst.msk [vmem:[#allocation0] sm:$0x1] %vm129, %v128
    %s131 = scalar_lea.vmem %s0, 10
    %v132 = vld [vmem:[%s131] sm:$0x1]
    %133 = vrot.lane.b32.xlu0 %v132, 30
    %v134 = vpop.permute.xlu0 %133
    %vm135 = vcmask 269552
    %136 = vst.msk [vmem:[#allocation0] sm:$0x1] %vm135, %v134
    %s137 = scalar_lea.vmem %s0, 9
    %v138 = vld [vmem:[%s137] sm:$0x1]
    %139 = vrot.lane.b32.xlu0 %v138, 27
    %v140 = vpop.permute.xlu0 %139
    %vm141 = vcmask 244952
    %142 = vst.msk [vmem:[#allocation0] sm:$0x1] %vm141, %v140
    %s143 = scalar_lea.vmem %s0, 8
    %v144 = vld [vmem:[%s143] sm:$0x1]
    %145 = vrot.lane.b32.xlu0 %v144, 24
    %v146 = vpop.permute.xlu0 %145
    %vm147 = vcmask 220352
    %148 = vst.msk [vmem:[#allocation0] sm:$0x1] %vm147, %v146
    %s149 = scalar_lea.vmem %s0, 7
    %v150 = vld [vmem:[%s149] sm:$0x1]
    %151 = vrot.lane.b32.xlu0 %v150, 21
    %v152 = vpop.permute.xlu0 %151
    %vm153 = vcmask 195752
    %154 = vst.msk [vmem:[#allocation0] sm:$0x1] %vm153, %v152
    %s155 = scalar_lea.vmem %s0, 6
    %v156 = vld [vmem:[%s155] sm:$0x1]
    %157 = vrot.lane.b32.xlu0 %v156, 18
    %v158 = vpop.permute.xlu0 %157
    %vm159 = vcmask 171152
    %160 = vst.msk [vmem:[#allocation0] sm:$0x1] %vm159, %v158
    %s161 = scalar_lea.vmem %s0, 5
    %v162 = vld [vmem:[%s161] sm:$0x1]
    %163 = vrot.lane.b32.xlu0 %v162, 15
    %v164 = vpop.permute.xlu0 %163
    %vm165 = vcmask 146552
    %166 = vst.msk [vmem:[#allocation0] sm:$0x1] %vm165, %v164
    %s167 = scalar_lea.vmem %s0, 4
    %v168 = vld [vmem:[%s167] sm:$0x1]
    %169 = vrot.lane.b32.xlu0 %v168, 12
    %v170 = vpop.permute.xlu0 %169
    %vm171 = vcmask 121952
    %172 = vst.msk [vmem:[#allocation0] sm:$0x1] %vm171, %v170
    %s173 = scalar_lea.vmem %s0, 3
    %v174 = vld [vmem:[%s173] sm:$0x1]
    %175 = vrot.lane.b32.xlu0 %v174, 9
    %v176 = vpop.permute.xlu0 %175
    %vm177 = vcmask 97352
    %178 = vst.msk [vmem:[#allocation0] sm:$0x1] %vm177, %v176
    %s179 = scalar_lea.vmem %s0, 2
    %v180 = vld [vmem:[%s179] sm:$0x1]
    %181 = vrot.lane.b32.xlu0 %v180, 6
    %v182 = vpop.permute.xlu0 %181
    %vm183 = vcmask 72752
    %184 = vst.msk [vmem:[#allocation0] sm:$0x1] %vm183, %v182
    %s185 = scalar_lea.vmem %s0, 1
    %v186 = vld [vmem:[%s185] sm:$0x1]
    %187 = vrot.lane.b32.xlu0 %v186, 3
    %v188 = vpop.permute.xlu0 %187
    %vm189 = vcmask 48152
    %190 = vst.msk [vmem:[#allocation0] sm:$0x1] %vm189, %v188
    %s192 = ssub.s32 2, 1
    %v193 = vld [vmem:[#allocation0] sm:%s192]
    %s195 = ssub.s32 2, 1
    %196 = vst [vmem:[%s1] sm:%s195] %v193

// kernel: autoencoder_forward.7
$region0: #{autoencoder_forward.7}
  #allocation0 [shape = 'u32[]', space=smem, size = 0x4, offset = 0x4, fixed_abs, tag = 'smem constant byte address 0x4 - core index']
  #allocation1 [shape = 'u32[72,128]{1,0:T(1,128)}', space=vmem, size = 0x9000, scoped, tag = 'internal scratch']
  %s0 = inlined_call_operand.vmem [shape: bf16[16,128], index: 0, kind: input, shape index: {}]
  %s1 = inlined_call_operand.vmem [shape: bf16[128,96], index: 1, kind: input, shape index: {}]
  %s2 = inlined_call_operand.vmem [shape: f32[1,96], index: 2, kind: input, shape index: {}]
  %s3 = inlined_call_operand.vmem [shape: f32[16,96], index: 3, kind: output, shape index: {}]
  %s4 = sld [smem:[#allocation0]]
  $region22: #{autoencoder_forward.7} parent=0
    _
  %s6 = ssub.s32 1, %s4
  %s7 = scalar_select 0, %s6, %s4
  // Predicated region
  $region2: #{autoencoder_forward.7} parent=0 // pred_check
    _
  $region3: #{autoencoder_forward.7} parent=0 // pred_check_branch
    %9 = sbr.rel (0) target = $region5
  $region4: #{autoencoder_forward.7} parent=0 // pred_region
    _
  $region5: #{autoencoder_forward.7} parent=0 // pred_fallthru
    _
  // Predicated region
  $region6: #{autoencoder_forward.7} parent=0 // pred_check
    _
  $region7: #{autoencoder_forward.7} parent=0 // pred_check_branch
    %11 = sbr.rel (0) target = $region9
  $region8: #{autoencoder_forward.7} parent=0 // pred_region
    _
  $region9: #{autoencoder_forward.7} parent=0 // pred_fallthru
    _
  // Predicated region
  $region10: #{autoencoder_forward.7} parent=0 // pred_check
    _
  $region11: #{autoencoder_forward.7} parent=0 // pred_check_branch
    %13 = sbr.rel (0) target = $region13
  $region12: #{autoencoder_forward.7} parent=0 // pred_region
    _
  $region13: #{autoencoder_forward.7} parent=0 // pred_fallthru
    _
  %v14 = vld [vmem:[%s0] sm:$0xf]
  %v15 = vld [vmem:[%s0 + $0x4] sm:$0xf]
  %v16 = vld [vmem:[%s1] sm:$0xf]
  %v17 = vld [vmem:[%s1 + $0x4] sm:$0xf]
  %v18 = vld [vmem:[%s1 + $0x8] sm:$0xf]
  %v19 = vld [vmem:[%s1 + $0xc] sm:$0xf]
  %v20 = vld [vmem:[%s1 + $0x10] sm:$0xf]
  %v21 = vld [vmem:[%s1 + $0x14] sm:$0xf]
  %v22 = vld [vmem:[%s1 + $0x18] sm:$0xf]
  %v23 = vld [vmem:[%s1 + $0x1c] sm:$0xf]
  %v24 = vld [vmem:[%s1 + $0x20] sm:$0xf]
  %v25 = vld [vmem:[%s1 + $0x24] sm:$0xf]
  %v26 = vld [vmem:[%s1 + $0x28] sm:$0xf]
  %v27 = vld [vmem:[%s1 + $0x2c] sm:$0xf]
  %v28 = vld [vmem:[%s1 + $0x30] sm:$0xf]
  %v29 = vld [vmem:[%s1 + $0x34] sm:$0xf]
  %v30 = vld [vmem:[%s1 + $0x38] sm:$0xf]
  %v31 = vld [vmem:[%s1 + $0x3c] sm:$0xf]
  %v32 = vld [vmem:[%s2] sm:$0x1]
  %v34 = vperm.slane %v32, 0
  %v38 = vunpack.c.l.b16 %v14
  %v39 = vunpack.c.l.b16 %v15
  %v40 = vpack.c.b16 %v39, %v38
  %v58 = vunpack.c.l.b16 %v16
  %v59 = vunpack.c.l.b16 %v17
  %v60 = vunpack.c.l.b16 %v18
  %v61 = vunpack.c.l.b16 %v19
  %v62 = vunpack.c.l.b16 %v20
  %v63 = vunpack.c.l.b16 %v21
  %v64 = vunpack.c.l.b16 %v22
  %v65 = vunpack.c.l.b16 %v23
  %v66 = vunpack.c.l.b16 %v24
  %v67 = vunpack.c.l.b16 %v25
  %v68 = vunpack.c.l.b16 %v26
  %v69 = vunpack.c.l.b16 %v27
  %v70 = vunpack.c.l.b16 %v28
  %v71 = vunpack.c.l.b16 %v29
  %v72 = vunpack.c.l.b16 %v30
  %v73 = vunpack.c.l.b16 %v31
  %v74 = vpack.c.b16 %v59, %v58
  %v75 = vpack.c.b16 %v61, %v60
  %v76 = vpack.c.b16 %v63, %v62
  %v77 = vpack.c.b16 %v65, %v64
  %v78 = vpack.c.b16 %v67, %v66
  %v79 = vpack.c.b16 %v69, %v68
  %v80 = vpack.c.b16 %v71, %v70
  %v81 = vpack.c.b16 %v73, %v72
  %90 = vmatpush.bf16.msra.mxu0 %v81
  %91 = vmatpush.bf16.msra.mxu0 %v80
  %92 = vmatpush.bf16.msra.mxu0 %v79
  %93 = vmatpush.bf16.msra.mxu0 %v78
  %94 = vmatpush.bf16.msra.mxu0 %v77
  %95 = vmatpush.bf16.msra.mxu0 %v76
  %96 = vmatpush.bf16.msra.mxu0 %v75
  %97 = vmatpush.bf16.msra.mxu0 %v74
  %98 = vmatmul.bf16.gmra.mxu0 %v40
  %v99 = vpop.f32.mrf.mxu0
  %v100 = vadd.f32 %v34, %v99
  %v101 = vpop.f32.mrf.mxu0
  %v102 = vadd.f32 %v34, %v101
  %103 = vdwg.mxu0
  %v104 = vand.u32 2147483647, %v100
  %v105 = vand.u32 2147483647, %v102
  %v106 = vsub.f32 0.0, %v104
  %v107 = vsub.f32 0.0, %v105
  %v108 = vmul.f32 %v106, 1.442695
  %v109 = vpow.pop %v108
  %v110 = vmul.f32 %v107, 1.442695
  %v111 = vpow.pop %v110
  %v112 = vadd.f32 %v109, 1.0
  %v113 = vadd.f32 %v111, 1.0
  %v114 = vrcp.pop %v112
  %v115 = vmul.f32 %v112, %v114
  %v116 = vsub.f32 1.0, %v115
  %v117 = vmul.f32 %v114, %v116
  %v118 = vadd.f32 %v114, %v117
  %vm119 = vweird.f32 %v112
  %vm120 = vweird.f32 %v114
  %vm121 = vmor %vm119, %vm120
  %v122 = vsel %vm121, %v114, %v118
  %v123 = vand.u32 2147483647, %v112
  %vm124 = vcmp.eq.f32.partialorder %v123, 8.507059e+37
  %v125 = vand.u32 %v112, 2147483648
  %v126 = vor.u32 1.1754944e-38, %v125
  %v127 = vsel %vm124, %v126, %v122
  %v128 = vmul.f32 1.0, %v127
  %v129 = vrcp.pop %v113
  %v130 = vmul.f32 %v113, %v129
  %v131 = vsub.f32 1.0, %v130
  %v132 = vmul.f32 %v129, %v131
  %v133 = vadd.f32 %v129, %v132
  %vm134 = vweird.f32 %v113
  %vm135 = vweird.f32 %v129
  %vm136 = vmor %vm134, %vm135
  %v137 = vsel %vm136, %v129, %v133
  %v138 = vand.u32 2147483647, %v113
  %vm139 = vcmp.eq.f32.partialorder %v138, 8.507059e+37
  %v140 = vand.u32 %v113, 2147483648
  %v141 = vor.u32 1.1754944e-38, %v140
  %v142 = vsel %vm139, %v141, %v137
  %v143 = vmul.f32 1.0, %v142
  %vm144 = vcmp.ge.f32.partialorder %v100, 0.0
  %vm145 = vcmp.ge.f32.partialorder %v102, 0.0
  %v146 = vsub.f32 1.0, %v128
  %v147 = vsub.f32 1.0, %v143
  %v148 = vsel %vm144, %v128, %v146
  %v149 = vsel %vm145, %v143, %v147
  %vm150 = vcmask 785408
  %151 = vst.msk [vmem:[%s3] sm:$0xff] %vm150, %v148
  %152 = vst.msk [vmem:[%s3 + $0x8] sm:$0xff] %vm150, %v149
  // Predicated region
  $region14: #{autoencoder_forward.7} parent=0 // pred_check
    _
  $region15: #{autoencoder_forward.7} parent=0 // pred_check_branch
    %154 = sbr.rel (0) target = $region17
  $region16: #{autoencoder_forward.7} parent=0 // pred_region
    _
  $region17: #{autoencoder_forward.7} parent=0 // pred_fallthru
    _
  // Predicated region
  $region18: #{autoencoder_forward.7} parent=0 // pred_check
    _
  $region19: #{autoencoder_forward.7} parent=0 // pred_check_branch
    %156 = sbr.rel (0) target = $region21
  $region20: #{autoencoder_forward.7} parent=0 // pred_region
    _
  $region21: #{autoencoder_forward.7} parent=0 // pred_fallthru
    _

</llo_original>
